<compile_context>
chip_gen: v7x
topology: tpu7x:2x2x1
jax: 0.10.0
libtpu: 0.0.40
codegen_flags: <defaults>
</compile_context>

<pallas_src>
import numpy as np
import jax
import jax.numpy as jnp
from jax.experimental import pallas as pl
from jax.experimental.pallas import tpu as pltpu

DATA_DIM = 8
N_C_LAYERS = 5
N_HIDDEN = 32      # module default is 100; small size chosen for the demo
HIDDEN_DIMS = 1    # -> each ScaleTranslate is Linear -> act -> Linear


def _round_up(v, m):
    return ((v + m - 1) // m) * m


# ----------------------------- Pallas kernel -------------------------------
def realnvp_fused_kernel(*refs):
    """Fully fused RealNVP forward on a (features, TILE_B) batch tile.

    refs = (xe_ref, xo_ref,
            [w1c, b1c, ws2, bs2, wt2, bt2] * N_C_LAYERS,
            xe_out_ref, xo_out_ref, logdet_ref)
    All arrays are transposed: rows = features / hidden units (sublanes),
    cols = batch (lanes).
    """
    xe_ref, xo_ref = refs[0], refs[1]
    n_w = 6 * N_C_LAYERS
    w_refs = refs[2:2 + n_w]
    xe_out_ref, xo_out_ref, ld_ref = refs[2 + n_w:2 + n_w + 3]

    xe = xe_ref[...]                                   # (n1, TILE_B) f32
    xo = xo_ref[...]                                   # (n2, TILE_B) f32
    ld = jnp.zeros(ld_ref.shape, jnp.float32)          # (1,  TILE_B)

    for layer in range(N_C_LAYERS):                    # statically unrolled
        w1c, b1c, ws2, bs2, wt2, bt2 = w_refs[6 * layer: 6 * layer + 6]

        # masks strictly alternate: even layers use even features as x1
        x1 = xe if (layer % 2 == 0) else xo            # (n1, TILE_B)

        # fused first Linear of scale+translate nets: (2H, n1) @ (n1, B)
        h = jnp.dot(w1c[...], x1,
                    preferred_element_type=jnp.float32) + b1c[...]   # (2H, B)
        hs = jnp.tanh(h[:N_HIDDEN, :])                 # scale branch  (H, B)
        ht = jnp.maximum(h[N_HIDDEN:, :], 0.0)         # translate     (H, B)

        # second Linears: (n2, H) @ (H, B)
        s = jnp.dot(ws2[...], hs,
                    preferred_element_type=jnp.float32) + bs2[...]   # (n2, B)
        t = jnp.dot(wt2[...], ht,
                    preferred_element_type=jnp.float32) + bt2[...]   # (n2, B)

        # affine coupling update on the passive half + log-det accumulation
        upd = (xo if (layer % 2 == 0) else xe) * jnp.exp(s) + t
        if layer % 2 == 0:
            xo = upd
        else:
            xe = upd
        ld = ld + jnp.sum(s, axis=0, keepdims=True)    # (1, B)

    xe_out_ref[...] = xe
    xo_out_ref[...] = xo
    ld_ref[...] = ld


# ----------------------------- wrapper --------------------------------------
def pack_params(params):
    """One-time layout prep: transpose weights, concat scale/translate L1."""
    packed = []
    for p in params:
        packed.append(dict(
            w1c=jnp.concatenate([p["ws1"].T, p["wt1"].T], axis=0),  # (2H, n1)
            b1c=jnp.concatenate([p["bs1"].T, p["bt1"].T], axis=0),  # (2H, 1)
            ws2=p["ws2"].T, bs2=p["bs2"].T,                         # (n2, H), (n2, 1)
            wt2=p["wt2"].T, bt2=p["bt2"].T,
        ))
    return packed


def realnvp_forward(x, packed_params):
    """RealNVP.forward: returns (x_out, sum_log_det_J).  x: (B, DATA_DIM)."""
    B, D = x.shape
    assert D % 2 == 0, "interleave glue assumes an even data_dim"
    n1, n2 = D // 2, D // 2
    H = packed_params[0]["w1c"].shape[0] // 2

    # batch tile on the lane axis: multiple of 128, capped for VMEM headroom
    tile_b = min(512, _round_up(max(B, 1), 128))
    padded_B = _round_up(B, tile_b)

    xT = jnp.transpose(x)                              # (D, B)
    if padded_B != B:
        xT = jnp.pad(xT, ((0, 0), (0, padded_B - B)))
    xeT = xT[0::2, :]                                  # even features (n1, pB)
    xoT = xT[1::2, :]                                  # odd  features (n2, pB)

    w_args, w_specs = [], []
    for p in packed_params:
        for name in ("w1c", "b1c", "ws2", "bs2", "wt2", "bt2"):
            a = p[name]
            w_args.append(a)
            w_specs.append(pl.BlockSpec(a.shape, lambda i: (0, 0)))

    x_spec_e = pl.BlockSpec((n1, tile_b), lambda i: (0, i))
    x_spec_o = pl.BlockSpec((n2, tile_b), lambda i: (0, i))
    ld_spec = pl.BlockSpec((1, tile_b), lambda i: (0, i))

    flops = N_C_LAYERS * padded_B * 2 * (n1 * 2 * H + 2 * H * n2)
    transc = N_C_LAYERS * padded_B * (H + n2)
    bytes_acc = 4 * (padded_B * (2 * D + 1) + sum(int(a.size) for a in w_args))

    xeT_out, xoT_out, ldT = pl.pallas_call(
        realnvp_fused_kernel,
        out_shape=(jax.ShapeDtypeStruct((n1, padded_B), jnp.float32),
                   jax.ShapeDtypeStruct((n2, padded_B), jnp.float32),
                   jax.ShapeDtypeStruct((1, padded_B), jnp.float32)),
        grid=(padded_B // tile_b,),
        in_specs=[x_spec_e, x_spec_o] + w_specs,
        out_specs=(x_spec_e, x_spec_o, ld_spec),
        compiler_params=pltpu.CompilerParams(
            dimension_semantics=("parallel",),
            vmem_limit_bytes=32 * 1024 * 1024),
        cost_estimate=pl.CostEstimate(flops=flops,
                                      transcendentals=transc,
                                      bytes_accessed=bytes_acc),
    )(xeT, xoT, *w_args)

    # interleave halves back to feature order, drop batch padding, transpose
    x_outT = jnp.stack([xeT_out, xoT_out], axis=1).reshape(D, padded_B)
    x_out = jnp.transpose(x_outT[:, :B])               # (B, D)
    sum_log_det = ldT[0, :B]                           # (B,)
    return x_out, sum_log_det


# ----------------------------- model setup ----------------------------------
def make_masks(data_dim, n_c_layers):
    """Replicates RealNVP.__init__ mask alternation (numpy -> static indices)."""
    masks = []
    mask = np.arange(data_dim) % 2
    for _ in range(n_c_layers):
        masks.append(mask % 2 == 0)      # CouplingLayer stores `mask % 2 == 0`
        mask = 1 - mask
    return masks


def init_params(key, data_dim, n_c_layers, n_hidden):
    """Deterministic PyTorch-Linear-style init; weights stored as (in, out)."""
    n1 = int(np.ceil(data_dim / 2))
    n2 = int(np.floor(data_dim / 2))

    def linear(k, fan_in, fan_out):
        bound = 1.0 / np.sqrt(fan_in)
        kw, kb = jax.random.split(k)
        w = jax.random.uniform(kw, (fan_in, fan_out), jnp.float32, -bound, bound)
        b = jax.random.uniform(kb, (1, fan_out), jnp.float32, -bound, bound)
        return w, b

    params = []
    for _ in range(n_c_layers):
        key, k1, k2, k3, k4 = jax.random.split(key, 5)
        ws1, bs1 = linear(k1, n1, n_hidden)       # scale: Linear(n1, H)
        ws2, bs2 = linear(k2, n_hidden, n2)       # scale: Linear(H, n2)
        wt1, bt1 = linear(k3, n1, n_hidden)       # translate: Linear(n1, H)
        wt2, bt2 = linear(k4, n_hidden, n2)       # translate: Linear(H, n2)
        params.append(dict(ws1=ws1, bs1=bs1, ws2=ws2, bs2=bs2,
                           wt1=wt1, bt1=bt1, wt2=wt2, bt2=bt2))
    return params


def realnvp_forward_reference(x, params, masks):
    """Pure-JAX reference (mirrors the PyTorch semantics) for verification."""
    sum_log_det = jnp.zeros((x.shape[0],), x.dtype)
    for p, m in zip(params, masks):
        idx1 = np.where(m)[0]
        idx2 = np.where(~m)[0]
        x1 = x[:, idx1]
        x2 = x[:, idx2]
        s = jnp.dot(jnp.tanh(jnp.dot(x1, p["ws1"]) + p["bs1"]), p["ws2"]) + p["bs2"]
        t = jnp.dot(jax.nn.relu(jnp.dot(x1, p["wt1"]) + p["bt1"]), p["wt2"]) + p["bt2"]
        x2n = x2 * jnp.exp(s) + t
        x = jnp.zeros_like(x).at[:, idx1].set(x1).at[:, idx2].set(x2n)
        sum_log_det = sum_log_det + jnp.sum(s, axis=1)
    return x, sum_log_det


# --------------------------------- main -------------------------------------
if __name__ == "__main__":
    key = jax.random.PRNGKey(0)
    kx, kp = jax.random.split(key)

    B = 2
    x = jax.random.normal(kx, (B, DATA_DIM), jnp.float32)

    masks = make_masks(DATA_DIM, N_C_LAYERS)
    params = init_params(kp, DATA_DIM, N_C_LAYERS, N_HIDDEN)
    packed = pack_params(params)

    x_out, sum_log_det = realnvp_forward(x, packed)
    x_out = jax.block_until_ready(x_out)
    sum_log_det = jax.block_until_ready(sum_log_det)

    x_ref, ld_ref = realnvp_forward_reference(x, params, masks)
    assert x_out.shape == (B, DATA_DIM) and sum_log_det.shape == (B,)
    np.testing.assert_allclose(np.asarray(x_out), np.asarray(x_ref),
                               rtol=1e-5, atol=1e-5)
    np.testing.assert_allclose(np.asarray(sum_log_det), np.asarray(ld_ref),
                               rtol=1e-5, atol=1e-5)

    print("KERNEL_OK")
</pallas_src>

<mosaic_0001>
module attributes {stable_mosaic.version = 11 : i64} {
  func.func @realnvp_fused_kernel(%arg0: i32, %arg1: memref<4x128xf32, #tpu.memory_space<vmem>>, %arg2: memref<4x128xf32, #tpu.memory_space<vmem>>, %arg3: memref<64x4xf32, #tpu.memory_space<vmem>>, %arg4: memref<64x1xf32, #tpu.memory_space<vmem>>, %arg5: memref<4x32xf32, #tpu.memory_space<vmem>>, %arg6: memref<4x1xf32, #tpu.memory_space<vmem>>, %arg7: memref<4x32xf32, #tpu.memory_space<vmem>>, %arg8: memref<4x1xf32, #tpu.memory_space<vmem>>, %arg9: memref<64x4xf32, #tpu.memory_space<vmem>>, %arg10: memref<64x1xf32, #tpu.memory_space<vmem>>, %arg11: memref<4x32xf32, #tpu.memory_space<vmem>>, %arg12: memref<4x1xf32, #tpu.memory_space<vmem>>, %arg13: memref<4x32xf32, #tpu.memory_space<vmem>>, %arg14: memref<4x1xf32, #tpu.memory_space<vmem>>, %arg15: memref<64x4xf32, #tpu.memory_space<vmem>>, %arg16: memref<64x1xf32, #tpu.memory_space<vmem>>, %arg17: memref<4x32xf32, #tpu.memory_space<vmem>>, %arg18: memref<4x1xf32, #tpu.memory_space<vmem>>, %arg19: memref<4x32xf32, #tpu.memory_space<vmem>>, %arg20: memref<4x1xf32, #tpu.memory_space<vmem>>, %arg21: memref<64x4xf32, #tpu.memory_space<vmem>>, %arg22: memref<64x1xf32, #tpu.memory_space<vmem>>, %arg23: memref<4x32xf32, #tpu.memory_space<vmem>>, %arg24: memref<4x1xf32, #tpu.memory_space<vmem>>, %arg25: memref<4x32xf32, #tpu.memory_space<vmem>>, %arg26: memref<4x1xf32, #tpu.memory_space<vmem>>, %arg27: memref<64x4xf32, #tpu.memory_space<vmem>>, %arg28: memref<64x1xf32, #tpu.memory_space<vmem>>, %arg29: memref<4x32xf32, #tpu.memory_space<vmem>>, %arg30: memref<4x1xf32, #tpu.memory_space<vmem>>, %arg31: memref<4x32xf32, #tpu.memory_space<vmem>>, %arg32: memref<4x1xf32, #tpu.memory_space<vmem>>, %arg33: memref<4x128xf32, #tpu.memory_space<vmem>>, %arg34: memref<4x128xf32, #tpu.memory_space<vmem>>, %arg35: memref<1x128xf32, #tpu.memory_space<vmem>>) attributes {dimension_semantics = [#tpu.dimension_semantics<parallel>], iteration_bounds = array<i64: 1>, scalar_prefetch = 0 : i64, scratch_operands = 0 : i64, tpu.core_type = #tpu.core_type<tc>, window_params = [{transform_indices = @transform_0, window_bounds = array<i64: 4, 128>}, {transform_indices = @transform_1, window_bounds = array<i64: 4, 128>}, {pipeline_mode = #tpu.pipeline_mode<synchronous>, transform_indices = @transform_2, window_bounds = array<i64: 64, 4>}, {pipeline_mode = #tpu.pipeline_mode<synchronous>, transform_indices = @transform_3, window_bounds = array<i64: 64, 1>}, {pipeline_mode = #tpu.pipeline_mode<synchronous>, transform_indices = @transform_4, window_bounds = array<i64: 4, 32>}, {pipeline_mode = #tpu.pipeline_mode<synchronous>, transform_indices = @transform_5, window_bounds = array<i64: 4, 1>}, {pipeline_mode = #tpu.pipeline_mode<synchronous>, transform_indices = @transform_6, window_bounds = array<i64: 4, 32>}, {pipeline_mode = #tpu.pipeline_mode<synchronous>, transform_indices = @transform_7, window_bounds = array<i64: 4, 1>}, {pipeline_mode = #tpu.pipeline_mode<synchronous>, transform_indices = @transform_8, window_bounds = array<i64: 64, 4>}, {pipeline_mode = #tpu.pipeline_mode<synchronous>, transform_indices = @transform_9, window_bounds = array<i64: 64, 1>}, {pipeline_mode = #tpu.pipeline_mode<synchronous>, transform_indices = @transform_10, window_bounds = array<i64: 4, 32>}, {pipeline_mode = #tpu.pipeline_mode<synchronous>, transform_indices = @transform_11, window_bounds = array<i64: 4, 1>}, {pipeline_mode = #tpu.pipeline_mode<synchronous>, transform_indices = @transform_12, window_bounds = array<i64: 4, 32>}, {pipeline_mode = #tpu.pipeline_mode<synchronous>, transform_indices = @transform_13, window_bounds = array<i64: 4, 1>}, {pipeline_mode = #tpu.pipeline_mode<synchronous>, transform_indices = @transform_14, window_bounds = array<i64: 64, 4>}, {pipeline_mode = #tpu.pipeline_mode<synchronous>, transform_indices = @transform_15, window_bounds = array<i64: 64, 1>}, {pipeline_mode = #tpu.pipeline_mode<synchronous>, transform_indices = @transform_16, window_bounds = array<i64: 4, 32>}, {pipeline_mode = #tpu.pipeline_mode<synchronous>, transform_indices = @transform_17, window_bounds = array<i64: 4, 1>}, {pipeline_mode = #tpu.pipeline_mode<synchronous>, transform_indices = @transform_18, window_bounds = array<i64: 4, 32>}, {pipeline_mode = #tpu.pipeline_mode<synchronous>, transform_indices = @transform_19, window_bounds = array<i64: 4, 1>}, {pipeline_mode = #tpu.pipeline_mode<synchronous>, transform_indices = @transform_20, window_bounds = array<i64: 64, 4>}, {pipeline_mode = #tpu.pipeline_mode<synchronous>, transform_indices = @transform_21, window_bounds = array<i64: 64, 1>}, {pipeline_mode = #tpu.pipeline_mode<synchronous>, transform_indices = @transform_22, window_bounds = array<i64: 4, 32>}, {pipeline_mode = #tpu.pipeline_mode<synchronous>, transform_indices = @transform_23, window_bounds = array<i64: 4, 1>}, {pipeline_mode = #tpu.pipeline_mode<synchronous>, transform_indices = @transform_24, window_bounds = array<i64: 4, 32>}, {pipeline_mode = #tpu.pipeline_mode<synchronous>, transform_indices = @transform_25, window_bounds = array<i64: 4, 1>}, {pipeline_mode = #tpu.pipeline_mode<synchronous>, transform_indices = @transform_26, window_bounds = array<i64: 64, 4>}, {pipeline_mode = #tpu.pipeline_mode<synchronous>, transform_indices = @transform_27, window_bounds = array<i64: 64, 1>}, {pipeline_mode = #tpu.pipeline_mode<synchronous>, transform_indices = @transform_28, window_bounds = array<i64: 4, 32>}, {pipeline_mode = #tpu.pipeline_mode<synchronous>, transform_indices = @transform_29, window_bounds = array<i64: 4, 1>}, {pipeline_mode = #tpu.pipeline_mode<synchronous>, transform_indices = @transform_30, window_bounds = array<i64: 4, 32>}, {pipeline_mode = #tpu.pipeline_mode<synchronous>, transform_indices = @transform_31, window_bounds = array<i64: 4, 1>}, {transform_indices = @transform_32, window_bounds = array<i64: 4, 128>}, {transform_indices = @transform_33, window_bounds = array<i64: 4, 128>}, {transform_indices = @transform_34, window_bounds = array<i64: 1, 128>}]} {
    %c0 = arith.constant 0 : index
    %c0_0 = arith.constant 0 : index
    %0 = vector.load %arg1[%c0, %c0_0] : memref<4x128xf32, #tpu.memory_space<vmem>>, vector<4x128xf32>
    %c0_1 = arith.constant 0 : index
    %c0_2 = arith.constant 0 : index
    %1 = vector.load %arg2[%c0_1, %c0_2] : memref<4x128xf32, #tpu.memory_space<vmem>>, vector<4x128xf32>
    %cst = arith.constant 0.000000e+00 : f32
    %2 = vector.broadcast %cst : f32 to vector<1x128xf32>
    %c0_3 = arith.constant 0 : index
    %c0_4 = arith.constant 0 : index
    %3 = vector.load %arg3[%c0_3, %c0_4] : memref<64x4xf32, #tpu.memory_space<vmem>>, vector<64x4xf32>
    %cst_5 = arith.constant dense<0.000000e+00> : vector<64x128xf32>
    %4 = tpu.matmul %3, %0, %cst_5 {dimension_numbers = #tpu.dot_dimension_numbers<[1], [0], [0], [1], [0, 0, 1, 1], [], []>} : vector<64x4xf32>, vector<4x128xf32>, vector<64x128xf32> -> vector<64x128xf32>
    %c0_6 = arith.constant 0 : index
    %c0_7 = arith.constant 0 : index
    %5 = vector.load %arg4[%c0_6, %c0_7] : memref<64x1xf32, #tpu.memory_space<vmem>>, vector<64x1xf32>
    %6 = vector.broadcast %5 : vector<64x1xf32> to vector<64x128xf32>
    %7 = arith.addf %4, %6 : vector<64x128xf32>
    %8 = vector.extract_strided_slice %7 {offsets = [0, 0], sizes = [32, 128], strides = [1, 1]} : vector<64x128xf32> to vector<32x128xf32>
    %9 = math.tanh %8 : vector<32x128xf32>
    %10 = vector.extract_strided_slice %7 {offsets = [32, 0], sizes = [32, 128], strides = [1, 1]} : vector<64x128xf32> to vector<32x128xf32>
    %cst_8 = arith.constant 0.000000e+00 : f32
    %11 = vector.broadcast %cst_8 : f32 to vector<32x128xf32>
    %12 = arith.maximumf %10, %11 : vector<32x128xf32>
    %c0_9 = arith.constant 0 : index
    %c0_10 = arith.constant 0 : index
    %13 = vector.load %arg5[%c0_9, %c0_10] : memref<4x32xf32, #tpu.memory_space<vmem>>, vector<4x32xf32>
    %cst_11 = arith.constant dense<0.000000e+00> : vector<4x128xf32>
    %14 = tpu.matmul %13, %9, %cst_11 {dimension_numbers = #tpu.dot_dimension_numbers<[1], [0], [0], [1], [0, 0, 1, 1], [], []>} : vector<4x32xf32>, vector<32x128xf32>, vector<4x128xf32> -> vector<4x128xf32>
    %c0_12 = arith.constant 0 : index
    %c0_13 = arith.constant 0 : index
    %15 = vector.load %arg6[%c0_12, %c0_13] : memref<4x1xf32, #tpu.memory_space<vmem>>, vector<4x1xf32>
    %16 = vector.broadcast %15 : vector<4x1xf32> to vector<4x128xf32>
    %17 = arith.addf %14, %16 : vector<4x128xf32>
    %c0_14 = arith.constant 0 : index
    %c0_15 = arith.constant 0 : index
    %18 = vector.load %arg7[%c0_14, %c0_15] : memref<4x32xf32, #tpu.memory_space<vmem>>, vector<4x32xf32>
    %cst_16 = arith.constant dense<0.000000e+00> : vector<4x128xf32>
    %19 = tpu.matmul %18, %12, %cst_16 {dimension_numbers = #tpu.dot_dimension_numbers<[1], [0], [0], [1], [0, 0, 1, 1], [], []>} : vector<4x32xf32>, vector<32x128xf32>, vector<4x128xf32> -> vector<4x128xf32>
    %c0_17 = arith.constant 0 : index
    %c0_18 = arith.constant 0 : index
    %20 = vector.load %arg8[%c0_17, %c0_18] : memref<4x1xf32, #tpu.memory_space<vmem>>, vector<4x1xf32>
    %21 = vector.broadcast %20 : vector<4x1xf32> to vector<4x128xf32>
    %22 = arith.addf %19, %21 : vector<4x128xf32>
    %23 = math.exp %17 : vector<4x128xf32>
    %24 = arith.mulf %1, %23 : vector<4x128xf32>
    %25 = arith.addf %24, %22 : vector<4x128xf32>
    %cst_19 = arith.constant dense<0.000000e+00> : vector<128xf32>
    %26 = vector.multi_reduction <add>, %17, %cst_19 [0] : vector<4x128xf32> to vector<128xf32>
    %27 = vector.shape_cast %26 : vector<128xf32> to vector<1x128xf32>
    %28 = arith.addf %2, %27 : vector<1x128xf32>
    %c0_20 = arith.constant 0 : index
    %c0_21 = arith.constant 0 : index
    %29 = vector.load %arg9[%c0_20, %c0_21] : memref<64x4xf32, #tpu.memory_space<vmem>>, vector<64x4xf32>
    %cst_22 = arith.constant dense<0.000000e+00> : vector<64x128xf32>
    %30 = tpu.matmul %29, %25, %cst_22 {dimension_numbers = #tpu.dot_dimension_numbers<[1], [0], [0], [1], [0, 0, 1, 1], [], []>} : vector<64x4xf32>, vector<4x128xf32>, vector<64x128xf32> -> vector<64x128xf32>
    %c0_23 = arith.constant 0 : index
    %c0_24 = arith.constant 0 : index
    %31 = vector.load %arg10[%c0_23, %c0_24] : memref<64x1xf32, #tpu.memory_space<vmem>>, vector<64x1xf32>
    %32 = vector.broadcast %31 : vector<64x1xf32> to vector<64x128xf32>
    %33 = arith.addf %30, %32 : vector<64x128xf32>
    %34 = vector.extract_strided_slice %33 {offsets = [0, 0], sizes = [32, 128], strides = [1, 1]} : vector<64x128xf32> to vector<32x128xf32>
    %35 = math.tanh %34 : vector<32x128xf32>
    %36 = vector.extract_strided_slice %33 {offsets = [32, 0], sizes = [32, 128], strides = [1, 1]} : vector<64x128xf32> to vector<32x128xf32>
    %cst_25 = arith.constant 0.000000e+00 : f32
    %37 = vector.broadcast %cst_25 : f32 to vector<32x128xf32>
    %38 = arith.maximumf %36, %37 : vector<32x128xf32>
    %c0_26 = arith.constant 0 : index
    %c0_27 = arith.constant 0 : index
    %39 = vector.load %arg11[%c0_26, %c0_27] : memref<4x32xf32, #tpu.memory_space<vmem>>, vector<4x32xf32>
    %cst_28 = arith.constant dense<0.000000e+00> : vector<4x128xf32>
    %40 = tpu.matmul %39, %35, %cst_28 {dimension_numbers = #tpu.dot_dimension_numbers<[1], [0], [0], [1], [0, 0, 1, 1], [], []>} : vector<4x32xf32>, vector<32x128xf32>, vector<4x128xf32> -> vector<4x128xf32>
    %c0_29 = arith.constant 0 : index
    %c0_30 = arith.constant 0 : index
    %41 = vector.load %arg12[%c0_29, %c0_30] : memref<4x1xf32, #tpu.memory_space<vmem>>, vector<4x1xf32>
    %42 = vector.broadcast %41 : vector<4x1xf32> to vector<4x128xf32>
    %43 = arith.addf %40, %42 : vector<4x128xf32>
    %c0_31 = arith.constant 0 : index
    %c0_32 = arith.constant 0 : index
    %44 = vector.load %arg13[%c0_31, %c0_32] : memref<4x32xf32, #tpu.memory_space<vmem>>, vector<4x32xf32>
    %cst_33 = arith.constant dense<0.000000e+00> : vector<4x128xf32>
    %45 = tpu.matmul %44, %38, %cst_33 {dimension_numbers = #tpu.dot_dimension_numbers<[1], [0], [0], [1], [0, 0, 1, 1], [], []>} : vector<4x32xf32>, vector<32x128xf32>, vector<4x128xf32> -> vector<4x128xf32>
    %c0_34 = arith.constant 0 : index
    %c0_35 = arith.constant 0 : index
    %46 = vector.load %arg14[%c0_34, %c0_35] : memref<4x1xf32, #tpu.memory_space<vmem>>, vector<4x1xf32>
    %47 = vector.broadcast %46 : vector<4x1xf32> to vector<4x128xf32>
    %48 = arith.addf %45, %47 : vector<4x128xf32>
    %49 = math.exp %43 : vector<4x128xf32>
    %50 = arith.mulf %0, %49 : vector<4x128xf32>
    %51 = arith.addf %50, %48 : vector<4x128xf32>
    %cst_36 = arith.constant dense<0.000000e+00> : vector<128xf32>
    %52 = vector.multi_reduction <add>, %43, %cst_36 [0] : vector<4x128xf32> to vector<128xf32>
    %53 = vector.shape_cast %52 : vector<128xf32> to vector<1x128xf32>
    %54 = arith.addf %28, %53 : vector<1x128xf32>
    %c0_37 = arith.constant 0 : index
    %c0_38 = arith.constant 0 : index
    %55 = vector.load %arg15[%c0_37, %c0_38] : memref<64x4xf32, #tpu.memory_space<vmem>>, vector<64x4xf32>
    %cst_39 = arith.constant dense<0.000000e+00> : vector<64x128xf32>
    %56 = tpu.matmul %55, %51, %cst_39 {dimension_numbers = #tpu.dot_dimension_numbers<[1], [0], [0], [1], [0, 0, 1, 1], [], []>} : vector<64x4xf32>, vector<4x128xf32>, vector<64x128xf32> -> vector<64x128xf32>
    %c0_40 = arith.constant 0 : index
    %c0_41 = arith.constant 0 : index
    %57 = vector.load %arg16[%c0_40, %c0_41] : memref<64x1xf32, #tpu.memory_space<vmem>>, vector<64x1xf32>
    %58 = vector.broadcast %57 : vector<64x1xf32> to vector<64x128xf32>
    %59 = arith.addf %56, %58 : vector<64x128xf32>
    %60 = vector.extract_strided_slice %59 {offsets = [0, 0], sizes = [32, 128], strides = [1, 1]} : vector<64x128xf32> to vector<32x128xf32>
    %61 = math.tanh %60 : vector<32x128xf32>
    %62 = vector.extract_strided_slice %59 {offsets = [32, 0], sizes = [32, 128], strides = [1, 1]} : vector<64x128xf32> to vector<32x128xf32>
    %cst_42 = arith.constant 0.000000e+00 : f32
    %63 = vector.broadcast %cst_42 : f32 to vector<32x128xf32>
    %64 = arith.maximumf %62, %63 : vector<32x128xf32>
    %c0_43 = arith.constant 0 : index
    %c0_44 = arith.constant 0 : index
    %65 = vector.load %arg17[%c0_43, %c0_44] : memref<4x32xf32, #tpu.memory_space<vmem>>, vector<4x32xf32>
    %cst_45 = arith.constant dense<0.000000e+00> : vector<4x128xf32>
    %66 = tpu.matmul %65, %61, %cst_45 {dimension_numbers = #tpu.dot_dimension_numbers<[1], [0], [0], [1], [0, 0, 1, 1], [], []>} : vector<4x32xf32>, vector<32x128xf32>, vector<4x128xf32> -> vector<4x128xf32>
    %c0_46 = arith.constant 0 : index
    %c0_47 = arith.constant 0 : index
    %67 = vector.load %arg18[%c0_46, %c0_47] : memref<4x1xf32, #tpu.memory_space<vmem>>, vector<4x1xf32>
    %68 = vector.broadcast %67 : vector<4x1xf32> to vector<4x128xf32>
    %69 = arith.addf %66, %68 : vector<4x128xf32>
    %c0_48 = arith.constant 0 : index
    %c0_49 = arith.constant 0 : index
    %70 = vector.load %arg19[%c0_48, %c0_49] : memref<4x32xf32, #tpu.memory_space<vmem>>, vector<4x32xf32>
    %cst_50 = arith.constant dense<0.000000e+00> : vector<4x128xf32>
    %71 = tpu.matmul %70, %64, %cst_50 {dimension_numbers = #tpu.dot_dimension_numbers<[1], [0], [0], [1], [0, 0, 1, 1], [], []>} : vector<4x32xf32>, vector<32x128xf32>, vector<4x128xf32> -> vector<4x128xf32>
    %c0_51 = arith.constant 0 : index
    %c0_52 = arith.constant 0 : index
    %72 = vector.load %arg20[%c0_51, %c0_52] : memref<4x1xf32, #tpu.memory_space<vmem>>, vector<4x1xf32>
    %73 = vector.broadcast %72 : vector<4x1xf32> to vector<4x128xf32>
    %74 = arith.addf %71, %73 : vector<4x128xf32>
    %75 = math.exp %69 : vector<4x128xf32>
    %76 = arith.mulf %25, %75 : vector<4x128xf32>
    %77 = arith.addf %76, %74 : vector<4x128xf32>
    %cst_53 = arith.constant dense<0.000000e+00> : vector<128xf32>
    %78 = vector.multi_reduction <add>, %69, %cst_53 [0] : vector<4x128xf32> to vector<128xf32>
    %79 = vector.shape_cast %78 : vector<128xf32> to vector<1x128xf32>
    %80 = arith.addf %54, %79 : vector<1x128xf32>
    %c0_54 = arith.constant 0 : index
    %c0_55 = arith.constant 0 : index
    %81 = vector.load %arg21[%c0_54, %c0_55] : memref<64x4xf32, #tpu.memory_space<vmem>>, vector<64x4xf32>
    %cst_56 = arith.constant dense<0.000000e+00> : vector<64x128xf32>
    %82 = tpu.matmul %81, %77, %cst_56 {dimension_numbers = #tpu.dot_dimension_numbers<[1], [0], [0], [1], [0, 0, 1, 1], [], []>} : vector<64x4xf32>, vector<4x128xf32>, vector<64x128xf32> -> vector<64x128xf32>
    %c0_57 = arith.constant 0 : index
    %c0_58 = arith.constant 0 : index
    %83 = vector.load %arg22[%c0_57, %c0_58] : memref<64x1xf32, #tpu.memory_space<vmem>>, vector<64x1xf32>
    %84 = vector.broadcast %83 : vector<64x1xf32> to vector<64x128xf32>
    %85 = arith.addf %82, %84 : vector<64x128xf32>
    %86 = vector.extract_strided_slice %85 {offsets = [0, 0], sizes = [32, 128], strides = [1, 1]} : vector<64x128xf32> to vector<32x128xf32>
    %87 = math.tanh %86 : vector<32x128xf32>
    %88 = vector.extract_strided_slice %85 {offsets = [32, 0], sizes = [32, 128], strides = [1, 1]} : vector<64x128xf32> to vector<32x128xf32>
    %cst_59 = arith.constant 0.000000e+00 : f32
    %89 = vector.broadcast %cst_59 : f32 to vector<32x128xf32>
    %90 = arith.maximumf %88, %89 : vector<32x128xf32>
    %c0_60 = arith.constant 0 : index
    %c0_61 = arith.constant 0 : index
    %91 = vector.load %arg23[%c0_60, %c0_61] : memref<4x32xf32, #tpu.memory_space<vmem>>, vector<4x32xf32>
    %cst_62 = arith.constant dense<0.000000e+00> : vector<4x128xf32>
    %92 = tpu.matmul %91, %87, %cst_62 {dimension_numbers = #tpu.dot_dimension_numbers<[1], [0], [0], [1], [0, 0, 1, 1], [], []>} : vector<4x32xf32>, vector<32x128xf32>, vector<4x128xf32> -> vector<4x128xf32>
    %c0_63 = arith.constant 0 : index
    %c0_64 = arith.constant 0 : index
    %93 = vector.load %arg24[%c0_63, %c0_64] : memref<4x1xf32, #tpu.memory_space<vmem>>, vector<4x1xf32>
    %94 = vector.broadcast %93 : vector<4x1xf32> to vector<4x128xf32>
    %95 = arith.addf %92, %94 : vector<4x128xf32>
    %c0_65 = arith.constant 0 : index
    %c0_66 = arith.constant 0 : index
    %96 = vector.load %arg25[%c0_65, %c0_66] : memref<4x32xf32, #tpu.memory_space<vmem>>, vector<4x32xf32>
    %cst_67 = arith.constant dense<0.000000e+00> : vector<4x128xf32>
    %97 = tpu.matmul %96, %90, %cst_67 {dimension_numbers = #tpu.dot_dimension_numbers<[1], [0], [0], [1], [0, 0, 1, 1], [], []>} : vector<4x32xf32>, vector<32x128xf32>, vector<4x128xf32> -> vector<4x128xf32>
    %c0_68 = arith.constant 0 : index
    %c0_69 = arith.constant 0 : index
    %98 = vector.load %arg26[%c0_68, %c0_69] : memref<4x1xf32, #tpu.memory_space<vmem>>, vector<4x1xf32>
    %99 = vector.broadcast %98 : vector<4x1xf32> to vector<4x128xf32>
    %100 = arith.addf %97, %99 : vector<4x128xf32>
    %101 = math.exp %95 : vector<4x128xf32>
    %102 = arith.mulf %51, %101 : vector<4x128xf32>
    %103 = arith.addf %102, %100 : vector<4x128xf32>
    %cst_70 = arith.constant dense<0.000000e+00> : vector<128xf32>
    %104 = vector.multi_reduction <add>, %95, %cst_70 [0] : vector<4x128xf32> to vector<128xf32>
    %105 = vector.shape_cast %104 : vector<128xf32> to vector<1x128xf32>
    %106 = arith.addf %80, %105 : vector<1x128xf32>
    %c0_71 = arith.constant 0 : index
    %c0_72 = arith.constant 0 : index
    %107 = vector.load %arg27[%c0_71, %c0_72] : memref<64x4xf32, #tpu.memory_space<vmem>>, vector<64x4xf32>
    %cst_73 = arith.constant dense<0.000000e+00> : vector<64x128xf32>
    %108 = tpu.matmul %107, %103, %cst_73 {dimension_numbers = #tpu.dot_dimension_numbers<[1], [0], [0], [1], [0, 0, 1, 1], [], []>} : vector<64x4xf32>, vector<4x128xf32>, vector<64x128xf32> -> vector<64x128xf32>
    %c0_74 = arith.constant 0 : index
    %c0_75 = arith.constant 0 : index
    %109 = vector.load %arg28[%c0_74, %c0_75] : memref<64x1xf32, #tpu.memory_space<vmem>>, vector<64x1xf32>
    %110 = vector.broadcast %109 : vector<64x1xf32> to vector<64x128xf32>
    %111 = arith.addf %108, %110 : vector<64x128xf32>
    %112 = vector.extract_strided_slice %111 {offsets = [0, 0], sizes = [32, 128], strides = [1, 1]} : vector<64x128xf32> to vector<32x128xf32>
    %113 = math.tanh %112 : vector<32x128xf32>
    %114 = vector.extract_strided_slice %111 {offsets = [32, 0], sizes = [32, 128], strides = [1, 1]} : vector<64x128xf32> to vector<32x128xf32>
    %cst_76 = arith.constant 0.000000e+00 : f32
    %115 = vector.broadcast %cst_76 : f32 to vector<32x128xf32>
    %116 = arith.maximumf %114, %115 : vector<32x128xf32>
    %c0_77 = arith.constant 0 : index
    %c0_78 = arith.constant 0 : index
    %117 = vector.load %arg29[%c0_77, %c0_78] : memref<4x32xf32, #tpu.memory_space<vmem>>, vector<4x32xf32>
    %cst_79 = arith.constant dense<0.000000e+00> : vector<4x128xf32>
    %118 = tpu.matmul %117, %113, %cst_79 {dimension_numbers = #tpu.dot_dimension_numbers<[1], [0], [0], [1], [0, 0, 1, 1], [], []>} : vector<4x32xf32>, vector<32x128xf32>, vector<4x128xf32> -> vector<4x128xf32>
    %c0_80 = arith.constant 0 : index
    %c0_81 = arith.constant 0 : index
    %119 = vector.load %arg30[%c0_80, %c0_81] : memref<4x1xf32, #tpu.memory_space<vmem>>, vector<4x1xf32>
    %120 = vector.broadcast %119 : vector<4x1xf32> to vector<4x128xf32>
    %121 = arith.addf %118, %120 : vector<4x128xf32>
    %c0_82 = arith.constant 0 : index
    %c0_83 = arith.constant 0 : index
    %122 = vector.load %arg31[%c0_82, %c0_83] : memref<4x32xf32, #tpu.memory_space<vmem>>, vector<4x32xf32>
    %cst_84 = arith.constant dense<0.000000e+00> : vector<4x128xf32>
    %123 = tpu.matmul %122, %116, %cst_84 {dimension_numbers = #tpu.dot_dimension_numbers<[1], [0], [0], [1], [0, 0, 1, 1], [], []>} : vector<4x32xf32>, vector<32x128xf32>, vector<4x128xf32> -> vector<4x128xf32>
    %c0_85 = arith.constant 0 : index
    %c0_86 = arith.constant 0 : index
    %124 = vector.load %arg32[%c0_85, %c0_86] : memref<4x1xf32, #tpu.memory_space<vmem>>, vector<4x1xf32>
    %125 = vector.broadcast %124 : vector<4x1xf32> to vector<4x128xf32>
    %126 = arith.addf %123, %125 : vector<4x128xf32>
    %127 = math.exp %121 : vector<4x128xf32>
    %128 = arith.mulf %77, %127 : vector<4x128xf32>
    %129 = arith.addf %128, %126 : vector<4x128xf32>
    %cst_87 = arith.constant dense<0.000000e+00> : vector<128xf32>
    %130 = vector.multi_reduction <add>, %121, %cst_87 [0] : vector<4x128xf32> to vector<128xf32>
    %131 = vector.shape_cast %130 : vector<128xf32> to vector<1x128xf32>
    %132 = arith.addf %106, %131 : vector<1x128xf32>
    %c0_88 = arith.constant 0 : index
    %c0_89 = arith.constant 0 : index
    %133 = vector.load %arg33[%c0_88, %c0_89] : memref<4x128xf32, #tpu.memory_space<vmem>>, vector<4x128xf32>
    tpu.vector_store %arg33[%c0_88, %c0_89], %103 {strides = array<i32>} : memref<4x128xf32, #tpu.memory_space<vmem>>, vector<4x128xf32>,
    %c0_90 = arith.constant 0 : index
    %c0_91 = arith.constant 0 : index
    %134 = vector.load %arg34[%c0_90, %c0_91] : memref<4x128xf32, #tpu.memory_space<vmem>>, vector<4x128xf32>
    tpu.vector_store %arg34[%c0_90, %c0_91], %129 {strides = array<i32>} : memref<4x128xf32, #tpu.memory_space<vmem>>, vector<4x128xf32>,
    %c0_92 = arith.constant 0 : index
    %c0_93 = arith.constant 0 : index
    %135 = vector.load %arg35[%c0_92, %c0_93] : memref<1x128xf32, #tpu.memory_space<vmem>>, vector<1x128xf32>
    tpu.vector_store %arg35[%c0_92, %c0_93], %132 {strides = array<i32>} : memref<1x128xf32, #tpu.memory_space<vmem>>, vector<1x128xf32>,
    return
  }
  func.func @transform_0(%arg0: i32) -> (i32, i32) {
    %c0_i32 = arith.constant 0 : i32
    %c0_i32_0 = arith.constant 0 : i32
    return %c0_i32, %arg0 : i32, i32
  }
  func.func @transform_1(%arg0: i32) -> (i32, i32) {
    %c0_i32 = arith.constant 0 : i32
    %c0_i32_0 = arith.constant 0 : i32
    return %c0_i32, %arg0 : i32, i32
  }
  func.func @transform_2(%arg0: i32) -> (i32, i32) {
    %c0_i32 = arith.constant 0 : i32
    %c0_i32_0 = arith.constant 0 : i32
    %c0_i32_1 = arith.constant 0 : i32
    return %c0_i32, %c0_i32_0 : i32, i32
  }
  func.func @transform_3(%arg0: i32) -> (i32, i32) {
    %c0_i32 = arith.constant 0 : i32
    %c0_i32_0 = arith.constant 0 : i32
    %c0_i32_1 = arith.constant 0 : i32
    return %c0_i32, %c0_i32_0 : i32, i32
  }
  func.func @transform_4(%arg0: i32) -> (i32, i32) {
    %c0_i32 = arith.constant 0 : i32
    %c0_i32_0 = arith.constant 0 : i32
    %c0_i32_1 = arith.constant 0 : i32
    return %c0_i32, %c0_i32_0 : i32, i32
  }
  func.func @transform_5(%arg0: i32) -> (i32, i32) {
    %c0_i32 = arith.constant 0 : i32
    %c0_i32_0 = arith.constant 0 : i32
    %c0_i32_1 = arith.constant 0 : i32
    return %c0_i32, %c0_i32_0 : i32, i32
  }
  func.func @transform_6(%arg0: i32) -> (i32, i32) {
    %c0_i32 = arith.constant 0 : i32
    %c0_i32_0 = arith.constant 0 : i32
    %c0_i32_1 = arith.constant 0 : i32
    return %c0_i32, %c0_i32_0 : i32, i32
  }
  func.func @transform_7(%arg0: i32) -> (i32, i32) {
    %c0_i32 = arith.constant 0 : i32
    %c0_i32_0 = arith.constant 0 : i32
    %c0_i32_1 = arith.constant 0 : i32
    return %c0_i32, %c0_i32_0 : i32, i32
  }
  func.func @transform_8(%arg0: i32) -> (i32, i32) {
    %c0_i32 = arith.constant 0 : i32
    %c0_i32_0 = arith.constant 0 : i32
    %c0_i32_1 = arith.constant 0 : i32
    return %c0_i32, %c0_i32_0 : i32, i32
  }
  func.func @transform_9(%arg0: i32) -> (i32, i32) {
    %c0_i32 = arith.constant 0 : i32
    %c0_i32_0 = arith.constant 0 : i32
    %c0_i32_1 = arith.constant 0 : i32
    return %c0_i32, %c0_i32_0 : i32, i32
  }
  func.func @transform_10(%arg0: i32) -> (i32, i32) {
    %c0_i32 = arith.constant 0 : i32
    %c0_i32_0 = arith.constant 0 : i32
    %c0_i32_1 = arith.constant 0 : i32
    return %c0_i32, %c0_i32_0 : i32, i32
  }
  func.func @transform_11(%arg0: i32) -> (i32, i32) {
    %c0_i32 = arith.constant 0 : i32
    %c0_i32_0 = arith.constant 0 : i32
    %c0_i32_1 = arith.constant 0 : i32
    return %c0_i32, %c0_i32_0 : i32, i32
  }
  func.func @transform_12(%arg0: i32) -> (i32, i32) {
    %c0_i32 = arith.constant 0 : i32
    %c0_i32_0 = arith.constant 0 : i32
    %c0_i32_1 = arith.constant 0 : i32
    return %c0_i32, %c0_i32_0 : i32, i32
  }
  func.func @transform_13(%arg0: i32) -> (i32, i32) {
    %c0_i32 = arith.constant 0 : i32
    %c0_i32_0 = arith.constant 0 : i32
    %c0_i32_1 = arith.constant 0 : i32
    return %c0_i32, %c0_i32_0 : i32, i32
  }
  func.func @transform_14(%arg0: i32) -> (i32, i32) {
    %c0_i32 = arith.constant 0 : i32
    %c0_i32_0 = arith.constant 0 : i32
    %c0_i32_1 = arith.constant 0 : i32
    return %c0_i32, %c0_i32_0 : i32, i32
  }
  func.func @transform_15(%arg0: i32) -> (i32, i32) {
    %c0_i32 = arith.constant 0 : i32
    %c0_i32_0 = arith.constant 0 : i32
    %c0_i32_1 = arith.constant 0 : i32
    return %c0_i32, %c0_i32_0 : i32, i32
  }
  func.func @transform_16(%arg0: i32) -> (i32, i32) {
    %c0_i32 = arith.constant 0 : i32
    %c0_i32_0 = arith.constant 0 : i32
    %c0_i32_1 = arith.constant 0 : i32
    return %c0_i32, %c0_i32_0 : i32, i32
  }
  func.func @transform_17(%arg0: i32) -> (i32, i32) {
    %c0_i32 = arith.constant 0 : i32
    %c0_i32_0 = arith.constant 0 : i32
    %c0_i32_1 = arith.constant 0 : i32
    return %c0_i32, %c0_i32_0 : i32, i32
  }
  func.func @transform_18(%arg0: i32) -> (i32, i32) {
    %c0_i32 = arith.constant 0 : i32
    %c0_i32_0 = arith.constant 0 : i32
    %c0_i32_1 = arith.constant 0 : i32
    return %c0_i32, %c0_i32_0 : i32, i32
  }
  func.func @transform_19(%arg0: i32) -> (i32, i32) {
    %c0_i32 = arith.constant 0 : i32
    %c0_i32_0 = arith.constant 0 : i32
    %c0_i32_1 = arith.constant 0 : i32
    return %c0_i32, %c0_i32_0 : i32, i32
  }
  func.func @transform_20(%arg0: i32) -> (i32, i32) {
    %c0_i32 = arith.constant 0 : i32
    %c0_i32_0 = arith.constant 0 : i32
    %c0_i32_1 = arith.constant 0 : i32
    return %c0_i32, %c0_i32_0 : i32, i32
  }
  func.func @transform_21(%arg0: i32) -> (i32, i32) {
    %c0_i32 = arith.constant 0 : i32
    %c0_i32_0 = arith.constant 0 : i32
    %c0_i32_1 = arith.constant 0 : i32
    return %c0_i32, %c0_i32_0 : i32, i32
  }
  func.func @transform_22(%arg0: i32) -> (i32, i32) {
    %c0_i32 = arith.constant 0 : i32
    %c0_i32_0 = arith.constant 0 : i32
    %c0_i32_1 = arith.constant 0 : i32
    return %c0_i32, %c0_i32_0 : i32, i32
  }
  func.func @transform_23(%arg0: i32) -> (i32, i32) {
    %c0_i32 = arith.constant 0 : i32
    %c0_i32_0 = arith.constant 0 : i32
    %c0_i32_1 = arith.constant 0 : i32
    return %c0_i32, %c0_i32_0 : i32, i32
  }
  func.func @transform_24(%arg0: i32) -> (i32, i32) {
    %c0_i32 = arith.constant 0 : i32
    %c0_i32_0 = arith.constant 0 : i32
    %c0_i32_1 = arith.constant 0 : i32
    return %c0_i32, %c0_i32_0 : i32, i32
  }
  func.func @transform_25(%arg0: i32) -> (i32, i32) {
    %c0_i32 = arith.constant 0 : i32
    %c0_i32_0 = arith.constant 0 : i32
    %c0_i32_1 = arith.constant 0 : i32
    return %c0_i32, %c0_i32_0 : i32, i32
  }
  func.func @transform_26(%arg0: i32) -> (i32, i32) {
    %c0_i32 = arith.constant 0 : i32
    %c0_i32_0 = arith.constant 0 : i32
    %c0_i32_1 = arith.constant 0 : i32
    return %c0_i32, %c0_i32_0 : i32, i32
  }
  func.func @transform_27(%arg0: i32) -> (i32, i32) {
    %c0_i32 = arith.constant 0 : i32
    %c0_i32_0 = arith.constant 0 : i32
    %c0_i32_1 = arith.constant 0 : i32
    return %c0_i32, %c0_i32_0 : i32, i32
  }
  func.func @transform_28(%arg0: i32) -> (i32, i32) {
    %c0_i32 = arith.constant 0 : i32
    %c0_i32_0 = arith.constant 0 : i32
    %c0_i32_1 = arith.constant 0 : i32
    return %c0_i32, %c0_i32_0 : i32, i32
  }
  func.func @transform_29(%arg0: i32) -> (i32, i32) {
    %c0_i32 = arith.constant 0 : i32
    %c0_i32_0 = arith.constant 0 : i32
    %c0_i32_1 = arith.constant 0 : i32
    return %c0_i32, %c0_i32_0 : i32, i32
  }
  func.func @transform_30(%arg0: i32) -> (i32, i32) {
    %c0_i32 = arith.constant 0 : i32
    %c0_i32_0 = arith.constant 0 : i32
    %c0_i32_1 = arith.constant 0 : i32
    return %c0_i32, %c0_i32_0 : i32, i32
  }
  func.func @transform_31(%arg0: i32) -> (i32, i32) {
    %c0_i32 = arith.constant 0 : i32
    %c0_i32_0 = arith.constant 0 : i32
    %c0_i32_1 = arith.constant 0 : i32
    return %c0_i32, %c0_i32_0 : i32, i32
  }
  func.func @transform_32(%arg0: i32) -> (i32, i32) {
    %c0_i32 = arith.constant 0 : i32
    %c0_i32_0 = arith.constant 0 : i32
    return %c0_i32, %arg0 : i32, i32
  }
  func.func @transform_33(%arg0: i32) -> (i32, i32) {
    %c0_i32 = arith.constant 0 : i32
    %c0_i32_0 = arith.constant 0 : i32
    return %c0_i32, %arg0 : i32, i32
  }
  func.func @transform_34(%arg0: i32) -> (i32, i32) {
    %c0_i32 = arith.constant 0 : i32
    %c0_i32_0 = arith.constant 0 : i32
    return %c0_i32, %arg0 : i32, i32
  }
}

</mosaic_0001>

<llo_original>
// kernel: tpu_custom_call.1
$region0: #{tpu_custom_call.1}
  #allocation0 [shape = 'u32[]', space=smem, size = 0x4, offset = 0x4, fixed_abs, tag = 'smem constant byte address 0x4 - core index']
  #allocation1 [shape = 'u32[144,128]{1,0:T(1,128)}', space=vmem, size = 0x12000, scoped, tag = 'internal scratch']
  %s0 = inlined_call_operand.smem [shape: u32[35], index: -1, kind: input, shape index: {}]
  %s1 = sld [smem:[%s0]]
  %s2 = scalar_lea.smem %s0, 1
  %s3 = sld [smem:[%s2]]
  %s4 = scalar_lea.smem %s0, 2
  %s5 = sld [smem:[%s4]]
  %s6 = scalar_lea.smem %s0, 3
  %s7 = sld [smem:[%s6]]
  %s8 = scalar_lea.smem %s0, 4
  %s9 = sld [smem:[%s8]]
  %s10 = scalar_lea.smem %s0, 5
  %s11 = sld [smem:[%s10]]
  %s12 = scalar_lea.smem %s0, 6
  %s13 = sld [smem:[%s12]]
  %s14 = scalar_lea.smem %s0, 7
  %s15 = sld [smem:[%s14]]
  %s16 = scalar_lea.smem %s0, 8
  %s17 = sld [smem:[%s16]]
  %s18 = scalar_lea.smem %s0, 9
  %s19 = sld [smem:[%s18]]
  %s20 = scalar_lea.smem %s0, 10
  %s21 = sld [smem:[%s20]]
  %s22 = scalar_lea.smem %s0, 11
  %s23 = sld [smem:[%s22]]
  %s24 = scalar_lea.smem %s0, 12
  %s25 = sld [smem:[%s24]]
  %s26 = scalar_lea.smem %s0, 13
  %s27 = sld [smem:[%s26]]
  %s28 = scalar_lea.smem %s0, 14
  %s29 = sld [smem:[%s28]]
  %s30 = scalar_lea.smem %s0, 15
  %s31 = sld [smem:[%s30]]
  %s32 = scalar_lea.smem %s0, 16
  %s33 = sld [smem:[%s32]]
  %s34 = scalar_lea.smem %s0, 17
  %s35 = sld [smem:[%s34]]
  %s36 = scalar_lea.smem %s0, 18
  %s37 = sld [smem:[%s36]]
  %s38 = scalar_lea.smem %s0, 19
  %s39 = sld [smem:[%s38]]
  %s40 = scalar_lea.smem %s0, 20
  %s41 = sld [smem:[%s40]]
  %s42 = scalar_lea.smem %s0, 21
  %s43 = sld [smem:[%s42]]
  %s44 = scalar_lea.smem %s0, 22
  %s45 = sld [smem:[%s44]]
  %s46 = scalar_lea.smem %s0, 23
  %s47 = sld [smem:[%s46]]
  %s48 = scalar_lea.smem %s0, 24
  %s49 = sld [smem:[%s48]]
  %s50 = scalar_lea.smem %s0, 25
  %s51 = sld [smem:[%s50]]
  %s52 = scalar_lea.smem %s0, 26
  %s53 = sld [smem:[%s52]]
  %s54 = scalar_lea.smem %s0, 27
  %s55 = sld [smem:[%s54]]
  %s56 = scalar_lea.smem %s0, 28
  %s57 = sld [smem:[%s56]]
  %s58 = scalar_lea.smem %s0, 29
  %s59 = sld [smem:[%s58]]
  %s60 = scalar_lea.smem %s0, 30
  %s61 = sld [smem:[%s60]]
  %s62 = scalar_lea.smem %s0, 31
  %s63 = sld [smem:[%s62]]
  %s64 = scalar_lea.smem %s0, 32
  %s65 = sld [smem:[%s64]]
  %s66 = scalar_lea.smem %s0, 33
  %s67 = sld [smem:[%s66]]
  %s68 = scalar_lea.smem %s0, 34
  %s69 = sld [smem:[%s68]]
  %70 = xla_tuple %s65, %s67, %s69
  %s71 = sld [smem:[#allocation0]]
  $region154: #{tpu_custom_call.1} parent=0
    _
  %s73 = ssub.s32 1, %s71
  %s74 = scalar_select 0, %s73, %s71
  $region1: #{tpu_custom_call.1} parent=0
    #allocation2 [shape = 'u8[2048]{0}', space=vmem, size = 0x800, scoped, tag = 'output window, operand 0, single buffered']
    #allocation3 [shape = 's32[1]{0}', space=sflag, size = 0x4, scoped, tag = 'scoped memory for tpu_custom_call.1']
    #allocation4 [shape = 'u8[2048]{0}', space=vmem, size = 0x800, scoped, tag = 'output window, operand 1, single buffered']
    #allocation5 [shape = 's32[1]{0}', space=sflag, size = 0x4, scoped, tag = 'scoped memory for tpu_custom_call.1']
    #allocation6 [shape = 'u8[512]{0}', space=vmem, size = 0x400, scoped, tag = 'output window, operand 2, single buffered']
    %75 = vsyncpa [#allocation3], 0
    %76 = vsyncpa [#allocation5], 0
    // Predicated region
    $region2: #{tpu_custom_call.1} parent=1 // pred_check
      _
    $region3: #{tpu_custom_call.1} parent=1 // pred_check_branch
      %78 = sbr.rel (0) target = $region5
    $region4: #{tpu_custom_call.1} parent=1 // pred_region
      _
    $region5: #{tpu_custom_call.1} parent=1 // pred_fallthru
      _
    // Predicated region
    $region6: #{tpu_custom_call.1} parent=1 // pred_check
      _
    $region7: #{tpu_custom_call.1} parent=1 // pred_check_branch
      %80 = sbr.rel (0) target = $region9
    $region8: #{tpu_custom_call.1} parent=1 // pred_region
      _
    $region9: #{tpu_custom_call.1} parent=1 // pred_fallthru
      _
    // Predicated region
    $region10: #{tpu_custom_call.1} parent=1 // pred_check
      _
    $region11: #{tpu_custom_call.1} parent=1 // pred_check_branch
      %82 = sbr.rel (0) target = $region13
    $region12: #{tpu_custom_call.1} parent=1 // pred_region
      _
    $region13: #{tpu_custom_call.1} parent=1 // pred_fallthru
      _
    // Predicated region
    $region14: #{tpu_custom_call.1} parent=1 // pred_check
      _
    $region15: #{tpu_custom_call.1} parent=1 // pred_check_branch
      %84 = sbr.rel (0) target = $region17
    $region16: #{tpu_custom_call.1} parent=1 // pred_region
      _
    $region17: #{tpu_custom_call.1} parent=1 // pred_fallthru
      _
    // Predicated region
    $region18: #{tpu_custom_call.1} parent=1 // pred_check
      _
    $region19: #{tpu_custom_call.1} parent=1 // pred_check_branch
      %86 = sbr.rel (0) target = $region21
    $region20: #{tpu_custom_call.1} parent=1 // pred_region
      _
    $region21: #{tpu_custom_call.1} parent=1 // pred_fallthru
      _
    // Predicated region
    $region22: #{tpu_custom_call.1} parent=1 // pred_check
      _
    $region23: #{tpu_custom_call.1} parent=1 // pred_check_branch
      %88 = sbr.rel (0) target = $region25
    $region24: #{tpu_custom_call.1} parent=1 // pred_region
      _
    $region25: #{tpu_custom_call.1} parent=1 // pred_fallthru
      _
    // Predicated region
    $region26: #{tpu_custom_call.1} parent=1 // pred_check
      _
    $region27: #{tpu_custom_call.1} parent=1 // pred_check_branch
      %90 = sbr.rel (0) target = $region29
    $region28: #{tpu_custom_call.1} parent=1 // pred_region
      _
    $region29: #{tpu_custom_call.1} parent=1 // pred_fallthru
      _
    // Predicated region
    $region30: #{tpu_custom_call.1} parent=1 // pred_check
      _
    $region31: #{tpu_custom_call.1} parent=1 // pred_check_branch
      %92 = sbr.rel (0) target = $region33
    $region32: #{tpu_custom_call.1} parent=1 // pred_region
      _
    $region33: #{tpu_custom_call.1} parent=1 // pred_fallthru
      _
    // Predicated region
    $region34: #{tpu_custom_call.1} parent=1 // pred_check
      _
    $region35: #{tpu_custom_call.1} parent=1 // pred_check_branch
      %94 = sbr.rel (0) target = $region37
    $region36: #{tpu_custom_call.1} parent=1 // pred_region
      _
    $region37: #{tpu_custom_call.1} parent=1 // pred_fallthru
      _
    // Predicated region
    $region38: #{tpu_custom_call.1} parent=1 // pred_check
      _
    $region39: #{tpu_custom_call.1} parent=1 // pred_check_branch
      %96 = sbr.rel (0) target = $region41
    $region40: #{tpu_custom_call.1} parent=1 // pred_region
      _
    $region41: #{tpu_custom_call.1} parent=1 // pred_fallthru
      _
    // Predicated region
    $region42: #{tpu_custom_call.1} parent=1 // pred_check
      _
    $region43: #{tpu_custom_call.1} parent=1 // pred_check_branch
      %98 = sbr.rel (0) target = $region45
    $region44: #{tpu_custom_call.1} parent=1 // pred_region
      _
    $region45: #{tpu_custom_call.1} parent=1 // pred_fallthru
      _
    // Predicated region
    $region46: #{tpu_custom_call.1} parent=1 // pred_check
      _
    $region47: #{tpu_custom_call.1} parent=1 // pred_check_branch
      %100 = sbr.rel (0) target = $region49
    $region48: #{tpu_custom_call.1} parent=1 // pred_region
      _
    $region49: #{tpu_custom_call.1} parent=1 // pred_fallthru
      _
    // Predicated region
    $region50: #{tpu_custom_call.1} parent=1 // pred_check
      _
    $region51: #{tpu_custom_call.1} parent=1 // pred_check_branch
      %102 = sbr.rel (0) target = $region53
    $region52: #{tpu_custom_call.1} parent=1 // pred_region
      _
    $region53: #{tpu_custom_call.1} parent=1 // pred_fallthru
      _
    // Predicated region
    $region54: #{tpu_custom_call.1} parent=1 // pred_check
      _
    $region55: #{tpu_custom_call.1} parent=1 // pred_check_branch
      %104 = sbr.rel (0) target = $region57
    $region56: #{tpu_custom_call.1} parent=1 // pred_region
      _
    $region57: #{tpu_custom_call.1} parent=1 // pred_fallthru
      _
    // Predicated region
    $region58: #{tpu_custom_call.1} parent=1 // pred_check
      _
    $region59: #{tpu_custom_call.1} parent=1 // pred_check_branch
      %106 = sbr.rel (0) target = $region61
    $region60: #{tpu_custom_call.1} parent=1 // pred_region
      _
    $region61: #{tpu_custom_call.1} parent=1 // pred_fallthru
      _
    // Predicated region
    $region62: #{tpu_custom_call.1} parent=1 // pred_check
      _
    $region63: #{tpu_custom_call.1} parent=1 // pred_check_branch
      %108 = sbr.rel (0) target = $region65
    $region64: #{tpu_custom_call.1} parent=1 // pred_region
      _
    $region65: #{tpu_custom_call.1} parent=1 // pred_fallthru
      _
    // Predicated region
    $region66: #{tpu_custom_call.1} parent=1 // pred_check
      _
    $region67: #{tpu_custom_call.1} parent=1 // pred_check_branch
      %110 = sbr.rel (0) target = $region69
    $region68: #{tpu_custom_call.1} parent=1 // pred_region
      _
    $region69: #{tpu_custom_call.1} parent=1 // pred_fallthru
      _
    // Predicated region
    $region70: #{tpu_custom_call.1} parent=1 // pred_check
      _
    $region71: #{tpu_custom_call.1} parent=1 // pred_check_branch
      %112 = sbr.rel (0) target = $region73
    $region72: #{tpu_custom_call.1} parent=1 // pred_region
      _
    $region73: #{tpu_custom_call.1} parent=1 // pred_fallthru
      _
    // Predicated region
    $region74: #{tpu_custom_call.1} parent=1 // pred_check
      _
    $region75: #{tpu_custom_call.1} parent=1 // pred_check_branch
      %114 = sbr.rel (0) target = $region77
    $region76: #{tpu_custom_call.1} parent=1 // pred_region
      _
    $region77: #{tpu_custom_call.1} parent=1 // pred_fallthru
      _
    // Predicated region
    $region78: #{tpu_custom_call.1} parent=1 // pred_check
      _
    $region79: #{tpu_custom_call.1} parent=1 // pred_check_branch
      %116 = sbr.rel (0) target = $region81
    $region80: #{tpu_custom_call.1} parent=1 // pred_region
      _
    $region81: #{tpu_custom_call.1} parent=1 // pred_fallthru
      _
    // Predicated region
    $region82: #{tpu_custom_call.1} parent=1 // pred_check
      _
    $region83: #{tpu_custom_call.1} parent=1 // pred_check_branch
      %118 = sbr.rel (0) target = $region85
    $region84: #{tpu_custom_call.1} parent=1 // pred_region
      _
    $region85: #{tpu_custom_call.1} parent=1 // pred_fallthru
      _
    // Predicated region
    $region86: #{tpu_custom_call.1} parent=1 // pred_check
      _
    $region87: #{tpu_custom_call.1} parent=1 // pred_check_branch
      %120 = sbr.rel (0) target = $region89
    $region88: #{tpu_custom_call.1} parent=1 // pred_region
      _
    $region89: #{tpu_custom_call.1} parent=1 // pred_fallthru
      _
    // Predicated region
    $region90: #{tpu_custom_call.1} parent=1 // pred_check
      _
    $region91: #{tpu_custom_call.1} parent=1 // pred_check_branch
      %122 = sbr.rel (0) target = $region93
    $region92: #{tpu_custom_call.1} parent=1 // pred_region
      _
    $region93: #{tpu_custom_call.1} parent=1 // pred_fallthru
      _
    // Predicated region
    $region94: #{tpu_custom_call.1} parent=1 // pred_check
      _
    $region95: #{tpu_custom_call.1} parent=1 // pred_check_branch
      %124 = sbr.rel (0) target = $region97
    $region96: #{tpu_custom_call.1} parent=1 // pred_region
      _
    $region97: #{tpu_custom_call.1} parent=1 // pred_fallthru
      _
    // Predicated region
    $region98: #{tpu_custom_call.1} parent=1 // pred_check
      _
    $region99: #{tpu_custom_call.1} parent=1 // pred_check_branch
      %126 = sbr.rel (0) target = $region101
    $region100: #{tpu_custom_call.1} parent=1 // pred_region
      _
    $region101: #{tpu_custom_call.1} parent=1 // pred_fallthru
      _
    // Predicated region
    $region102: #{tpu_custom_call.1} parent=1 // pred_check
      _
    $region103: #{tpu_custom_call.1} parent=1 // pred_check_branch
      %128 = sbr.rel (0) target = $region105
    $region104: #{tpu_custom_call.1} parent=1 // pred_region
      _
    $region105: #{tpu_custom_call.1} parent=1 // pred_fallthru
      _
    // Predicated region
    $region106: #{tpu_custom_call.1} parent=1 // pred_check
      _
    $region107: #{tpu_custom_call.1} parent=1 // pred_check_branch
      %130 = sbr.rel (0) target = $region109
    $region108: #{tpu_custom_call.1} parent=1 // pred_region
      _
    $region109: #{tpu_custom_call.1} parent=1 // pred_fallthru
      _
    // Predicated region
    $region110: #{tpu_custom_call.1} parent=1 // pred_check
      _
    $region111: #{tpu_custom_call.1} parent=1 // pred_check_branch
      %132 = sbr.rel (0) target = $region113
    $region112: #{tpu_custom_call.1} parent=1 // pred_region
      _
    $region113: #{tpu_custom_call.1} parent=1 // pred_fallthru
      _
    // Predicated region
    $region114: #{tpu_custom_call.1} parent=1 // pred_check
      _
    $region115: #{tpu_custom_call.1} parent=1 // pred_check_branch
      %134 = sbr.rel (0) target = $region117
    $region116: #{tpu_custom_call.1} parent=1 // pred_region
      _
    $region117: #{tpu_custom_call.1} parent=1 // pred_fallthru
      _
    // Predicated region
    $region118: #{tpu_custom_call.1} parent=1 // pred_check
      _
    $region119: #{tpu_custom_call.1} parent=1 // pred_check_branch
      %136 = sbr.rel (0) target = $region121
    $region120: #{tpu_custom_call.1} parent=1 // pred_region
      _
    $region121: #{tpu_custom_call.1} parent=1 // pred_fallthru
      _
    // Predicated region
    $region122: #{tpu_custom_call.1} parent=1 // pred_check
      _
    $region123: #{tpu_custom_call.1} parent=1 // pred_check_branch
      %138 = sbr.rel (0) target = $region125
    $region124: #{tpu_custom_call.1} parent=1 // pred_region
      _
    $region125: #{tpu_custom_call.1} parent=1 // pred_fallthru
      _
    // Predicated region
    $region126: #{tpu_custom_call.1} parent=1 // pred_check
      _
    $region127: #{tpu_custom_call.1} parent=1 // pred_check_branch
      %140 = sbr.rel (0) target = $region129
    $region128: #{tpu_custom_call.1} parent=1 // pred_region
      _
    $region129: #{tpu_custom_call.1} parent=1 // pred_fallthru
      _
    %v141 = vld [vmem:[%s1] sm:$0xf]
    %v142 = vld [vmem:[%s3] sm:$0xf]
    %v143 = vld [vmem:[%s5] sm:$0xff]
    %v144 = vld [vmem:[%s5 + $0x8] sm:$0xff]
    %v145 = vld [vmem:[%s5 + $0x10] sm:$0xff]
    %v146 = vld [vmem:[%s5 + $0x18] sm:$0xff]
    %v147 = vld [vmem:[%s5 + $0x20] sm:$0xff]
    %v148 = vld [vmem:[%s5 + $0x28] sm:$0xff]
    %v149 = vld [vmem:[%s5 + $0x30] sm:$0xff]
    %v150 = vld [vmem:[%s5 + $0x38] sm:$0xff]
    %v151 = vld [vmem:[%s7] sm:$0xff]
    %v152 = vld [vmem:[%s7 + $0x8] sm:$0xff]
    %v153 = vld [vmem:[%s7 + $0x10] sm:$0xff]
    %v154 = vld [vmem:[%s7 + $0x18] sm:$0xff]
    %v155 = vld [vmem:[%s7 + $0x20] sm:$0xff]
    %v156 = vld [vmem:[%s7 + $0x28] sm:$0xff]
    %v157 = vld [vmem:[%s7 + $0x30] sm:$0xff]
    %v158 = vld [vmem:[%s7 + $0x38] sm:$0xff]
    %160 = vset.pattern.permute.xlu0 0
    %161 = vperm.xlu0 %160, %v151
    %v162 = vpop.permute.xlu0 %161
    %165 = vset.pattern.permute.xlu0 0
    %166 = vperm.xlu0 %165, %v152
    %v167 = vpop.permute.xlu0 %166
    %170 = vset.pattern.permute.xlu0 0
    %171 = vperm.xlu0 %170, %v153
    %v172 = vpop.permute.xlu0 %171
    %175 = vset.pattern.permute.xlu0 0
    %176 = vperm.xlu0 %175, %v154
    %v177 = vpop.permute.xlu0 %176
    %180 = vset.pattern.permute.xlu0 0
    %181 = vperm.xlu0 %180, %v155
    %v182 = vpop.permute.xlu0 %181
    %185 = vset.pattern.permute.xlu0 0
    %186 = vperm.xlu0 %185, %v156
    %v187 = vpop.permute.xlu0 %186
    %190 = vset.pattern.permute.xlu0 0
    %191 = vperm.xlu0 %190, %v157
    %v192 = vpop.permute.xlu0 %191
    %195 = vset.pattern.permute.xlu0 0
    %196 = vperm.xlu0 %195, %v158
    %v197 = vpop.permute.xlu0 %196
    %vm199 = vcmask 31744
    %v201 = vsel %vm199, %v143, 0
    %v204 = vsel %vm199, %v144, 0
    %v207 = vsel %vm199, %v145, 0
    %v210 = vsel %vm199, %v146, 0
    %v213 = vsel %vm199, %v147, 0
    %v216 = vsel %vm199, %v148, 0
    %v219 = vsel %vm199, %v149, 0
    %v222 = vsel %vm199, %v150, 0
    %vm224 = vcmask 1043456
    %v226 = vsel %vm224, %v141, 0
    %228 = vmatprep.subr.mxu0 0.0
    %229 = vmatpush1.msra.mxu0 %v226
    %230 = vmatprep.subr.mxu0 0.0
    %231 = vmatpush1.msra.mxu0 0.0
    %232 = vmatprep.subr.mxu0 0.0
    %233 = vmatpush1.msra.mxu0 0.0
    %234 = vmatprep.subr.mxu0 0.0
    %235 = vmatpush1.msra.mxu0 0.0
    %236 = vmatprep.subr.mxu0 0.0
    %237 = vmatpush1.msra.mxu0 0.0
    %238 = vmatprep.subr.mxu0 0.0
    %239 = vmatpush1.msra.mxu0 0.0
    %240 = vmatprep.subr.mxu0 0.0
    %241 = vmatpush1.msra.mxu0 0.0
    %242 = vmatprep.subr.mxu0 0.0
    %243 = vmatpush1.msra.mxu0 0.0
    %244 = vmatprep.subr.mxu0 0.0
    %245 = vmatpush1.msra.mxu0 0.0
    %246 = vmatprep.subr.mxu0 0.0
    %247 = vmatpush1.msra.mxu0 0.0
    %248 = vmatprep.subr.mxu0 0.0
    %249 = vmatpush1.msra.mxu0 0.0
    %250 = vmatprep.subr.mxu0 0.0
    %251 = vmatpush1.msra.mxu0 0.0
    %252 = vmatprep.subr.mxu0 0.0
    %253 = vmatpush1.msra.mxu0 0.0
    %254 = vmatprep.subr.mxu0 0.0
    %255 = vmatpush1.msra.mxu0 0.0
    %256 = vmatprep.subr.mxu0 0.0
    %257 = vmatpush1.msra.mxu0 0.0
    %258 = vmatprep.subr.mxu0 0.0
    %259 = vmatpush1.msra.mxu0 0.0
    %260 = vmatprep.subr.mxu0 0.0
    %261 = vmatpush1.msra.mxu0 0.0
    %262 = vmatprep.subr.mxu0 0.0
    %263 = vmatpush1.msra.mxu0 0.0
    %264 = vmatprep.subr.mxu0 0.0
    %265 = vmatpush1.msra.mxu0 0.0
    %266 = vmatprep.subr.mxu0 0.0
    %267 = vmatpush1.msra.mxu0 0.0
    %268 = vmatprep.subr.mxu0 0.0
    %269 = vmatpush1.msra.mxu0 0.0
    %270 = vmatprep.subr.mxu0 0.0
    %271 = vmatpush1.msra.mxu0 0.0
    %272 = vmatprep.subr.mxu0 0.0
    %273 = vmatpush1.msra.mxu0 0.0
    %274 = vmatprep.subr.mxu0 0.0
    %275 = vmatpush1.msra.mxu0 0.0
    %276 = vmatprep.subr.mxu0 0.0
    %277 = vmatpush1.msra.mxu0 0.0
    %278 = vmatprep.subr.mxu0 0.0
    %279 = vmatpush1.msra.mxu0 0.0
    %280 = vmatprep.subr.mxu0 0.0
    %281 = vmatpush1.msra.mxu0 0.0
    %282 = vmatprep.subr.mxu0 0.0
    %283 = vmatpush1.msra.mxu0 0.0
    %284 = vmatprep.subr.mxu0 0.0
    %285 = vmatpush1.msra.mxu0 0.0
    %286 = vmatprep.subr.mxu0 0.0
    %287 = vmatpush1.msra.mxu0 0.0
    %288 = vmatprep.subr.mxu0 0.0
    %289 = vmatpush1.msra.mxu0 0.0
    %290 = vmatprep.subr.mxu0 0.0
    %291 = vmatpush1.msra.mxu0 0.0
    %292 = vmatprep.mubr.f32.mxu0 0.0
    %293 = vmatmul.mubr.f32.gmra.mrb[0].mxu0 %v201
    %v294 = vpop.f32.mrb[0].mxu0
    %v295 = vadd.f32 %v162, %v294
    %v296 = vpop.f32.mrb[0].mxu0
    %297 = vmatprep.mubr.f32.mxu0 0.0
    %298 = vmatmul.mubr.f32.gmra.mrb[0].mxu0 %v204
    %v299 = vpop.f32.mrb[0].mxu0
    %v300 = vadd.f32 %v167, %v299
    %v301 = vpop.f32.mrb[0].mxu0
    %302 = vmatprep.mubr.f32.mxu0 0.0
    %303 = vmatmul.mubr.f32.gmra.mrb[0].mxu0 %v207
    %v304 = vpop.f32.mrb[0].mxu0
    %v305 = vadd.f32 %v172, %v304
    %v306 = vpop.f32.mrb[0].mxu0
    %307 = vmatprep.mubr.f32.mxu0 0.0
    %308 = vmatmul.mubr.f32.gmra.mrb[0].mxu0 %v210
    %v309 = vpop.f32.mrb[0].mxu0
    %v310 = vadd.f32 %v177, %v309
    %v311 = vpop.f32.mrb[0].mxu0
    %312 = vmatprep.mubr.f32.mxu0 0.0
    %313 = vmatmul.mubr.f32.gmra.mrb[0].mxu0 %v213
    %v314 = vpop.f32.mrb[0].mxu0
    %v315 = vadd.f32 %v182, %v314
    %v316 = vpop.f32.mrb[0].mxu0
    %317 = vmatprep.mubr.f32.mxu0 0.0
    %318 = vmatmul.mubr.f32.gmra.mrb[0].mxu0 %v216
    %v319 = vpop.f32.mrb[0].mxu0
    %v320 = vadd.f32 %v187, %v319
    %v321 = vpop.f32.mrb[0].mxu0
    %322 = vmatprep.mubr.f32.mxu0 0.0
    %323 = vmatmul.mubr.f32.gmra.mrb[0].mxu0 %v219
    %v324 = vpop.f32.mrb[0].mxu0
    %v325 = vadd.f32 %v192, %v324
    %v326 = vpop.f32.mrb[0].mxu0
    %327 = vmatprep.mubr.f32.mxu0 0.0
    %328 = vmatmul.mubr.f32.gmra.mrb[0].mxu0 %v222
    %v329 = vpop.f32.mrb[0].mxu0
    %v330 = vadd.f32 %v197, %v329
    %v331 = vpop.f32.mrb[0].mxu0
    %332 = vdwg.mxu0
    %v333 = vtanh.pop %v295
    %v334 = vtanh.pop %v300
    %v335 = vtanh.pop %v305
    %v336 = vtanh.pop %v310
    %v337 = vmax.f32 %v315, 0.0
    %v338 = vmax.f32 %v320, 0.0
    %v339 = vmax.f32 %v325, 0.0
    %v340 = vmax.f32 %v330, 0.0
    %v341 = vld [vmem:[%s9] sm:$0xf]
    %v342 = vld [vmem:[%s11] sm:$0xf]
    %344 = vset.pattern.permute.xlu0 0
    %345 = vperm.xlu0 %344, %v342
    %v346 = vpop.permute.xlu0 %345
    %vm348 = vcmask 261120
    %v350 = vsel %vm348, %v341, 0
    %352 = vmatprep.subr.mxu0 0.0
    %353 = vmatpush1.msra.mxu0 %v333
    %354 = vmatprep.subr.mxu0 0.0
    %355 = vmatpush1.msra.mxu0 %v334
    %356 = vmatprep.subr.mxu0 0.0
    %357 = vmatpush1.msra.mxu0 %v335
    %358 = vmatprep.subr.mxu0 0.0
    %359 = vmatpush1.msra.mxu0 %v336
    %360 = vmatprep.subr.mxu0 0.0
    %361 = vmatpush1.msra.mxu0 0.0
    %362 = vmatprep.subr.mxu0 0.0
    %363 = vmatpush1.msra.mxu0 0.0
    %364 = vmatprep.subr.mxu0 0.0
    %365 = vmatpush1.msra.mxu0 0.0
    %366 = vmatprep.subr.mxu0 0.0
    %367 = vmatpush1.msra.mxu0 0.0
    %368 = vmatprep.subr.mxu0 0.0
    %369 = vmatpush1.msra.mxu0 0.0
    %370 = vmatprep.subr.mxu0 0.0
    %371 = vmatpush1.msra.mxu0 0.0
    %372 = vmatprep.subr.mxu0 0.0
    %373 = vmatpush1.msra.mxu0 0.0
    %374 = vmatprep.subr.mxu0 0.0
    %375 = vmatpush1.msra.mxu0 0.0
    %376 = vmatprep.subr.mxu0 0.0
    %377 = vmatpush1.msra.mxu0 0.0
    %378 = vmatprep.subr.mxu0 0.0
    %379 = vmatpush1.msra.mxu0 0.0
    %380 = vmatprep.subr.mxu0 0.0
    %381 = vmatpush1.msra.mxu0 0.0
    %382 = vmatprep.subr.mxu0 0.0
    %383 = vmatpush1.msra.mxu0 0.0
    %384 = vmatprep.subr.mxu0 0.0
    %385 = vmatpush1.msra.mxu0 0.0
    %386 = vmatprep.subr.mxu0 0.0
    %387 = vmatpush1.msra.mxu0 0.0
    %388 = vmatprep.subr.mxu0 0.0
    %389 = vmatpush1.msra.mxu0 0.0
    %390 = vmatprep.subr.mxu0 0.0
    %391 = vmatpush1.msra.mxu0 0.0
    %392 = vmatprep.subr.mxu0 0.0
    %393 = vmatpush1.msra.mxu0 0.0
    %394 = vmatprep.subr.mxu0 0.0
    %395 = vmatpush1.msra.mxu0 0.0
    %396 = vmatprep.subr.mxu0 0.0
    %397 = vmatpush1.msra.mxu0 0.0
    %398 = vmatprep.subr.mxu0 0.0
    %399 = vmatpush1.msra.mxu0 0.0
    %400 = vmatprep.subr.mxu0 0.0
    %401 = vmatpush1.msra.mxu0 0.0
    %402 = vmatprep.subr.mxu0 0.0
    %403 = vmatpush1.msra.mxu0 0.0
    %404 = vmatprep.subr.mxu0 0.0
    %405 = vmatpush1.msra.mxu0 0.0
    %406 = vmatprep.subr.mxu0 0.0
    %407 = vmatpush1.msra.mxu0 0.0
    %408 = vmatprep.subr.mxu0 0.0
    %409 = vmatpush1.msra.mxu0 0.0
    %410 = vmatprep.subr.mxu0 0.0
    %411 = vmatpush1.msra.mxu0 0.0
    %412 = vmatprep.subr.mxu0 0.0
    %413 = vmatpush1.msra.mxu0 0.0
    %414 = vmatprep.subr.mxu0 0.0
    %415 = vmatpush1.msra.mxu0 0.0
    %416 = vmatprep.mubr.f32.mxu0 0.0
    %417 = vmatmul.mubr.f32.gmra.mrb[0].mxu0 %v350
    %v418 = vpop.f32.mrb[0].mxu0
    %v419 = vadd.f32 %v346, %v418
    %v420 = vpop.f32.mrb[0].mxu0
    %421 = vdwg.mxu0
    %v422 = vld [vmem:[%s13] sm:$0xf]
    %v423 = vld [vmem:[%s15] sm:$0xf]
    %425 = vset.pattern.permute.xlu0 0
    %426 = vperm.xlu0 %425, %v423
    %v427 = vpop.permute.xlu0 %426
    %v430 = vsel %vm348, %v422, 0
    %432 = vmatprep.subr.mxu0 0.0
    %433 = vmatpush1.msra.mxu0 %v337
    %434 = vmatprep.subr.mxu0 0.0
    %435 = vmatpush1.msra.mxu0 %v338
    %436 = vmatprep.subr.mxu0 0.0
    %437 = vmatpush1.msra.mxu0 %v339
    %438 = vmatprep.subr.mxu0 0.0
    %439 = vmatpush1.msra.mxu0 %v340
    %440 = vmatprep.subr.mxu0 0.0
    %441 = vmatpush1.msra.mxu0 0.0
    %442 = vmatprep.subr.mxu0 0.0
    %443 = vmatpush1.msra.mxu0 0.0
    %444 = vmatprep.subr.mxu0 0.0
    %445 = vmatpush1.msra.mxu0 0.0
    %446 = vmatprep.subr.mxu0 0.0
    %447 = vmatpush1.msra.mxu0 0.0
    %448 = vmatprep.subr.mxu0 0.0
    %449 = vmatpush1.msra.mxu0 0.0
    %450 = vmatprep.subr.mxu0 0.0
    %451 = vmatpush1.msra.mxu0 0.0
    %452 = vmatprep.subr.mxu0 0.0
    %453 = vmatpush1.msra.mxu0 0.0
    %454 = vmatprep.subr.mxu0 0.0
    %455 = vmatpush1.msra.mxu0 0.0
    %456 = vmatprep.subr.mxu0 0.0
    %457 = vmatpush1.msra.mxu0 0.0
    %458 = vmatprep.subr.mxu0 0.0
    %459 = vmatpush1.msra.mxu0 0.0
    %460 = vmatprep.subr.mxu0 0.0
    %461 = vmatpush1.msra.mxu0 0.0
    %462 = vmatprep.subr.mxu0 0.0
    %463 = vmatpush1.msra.mxu0 0.0
    %464 = vmatprep.subr.mxu0 0.0
    %465 = vmatpush1.msra.mxu0 0.0
    %466 = vmatprep.subr.mxu0 0.0
    %467 = vmatpush1.msra.mxu0 0.0
    %468 = vmatprep.subr.mxu0 0.0
    %469 = vmatpush1.msra.mxu0 0.0
    %470 = vmatprep.subr.mxu0 0.0
    %471 = vmatpush1.msra.mxu0 0.0
    %472 = vmatprep.subr.mxu0 0.0
    %473 = vmatpush1.msra.mxu0 0.0
    %474 = vmatprep.subr.mxu0 0.0
    %475 = vmatpush1.msra.mxu0 0.0
    %476 = vmatprep.subr.mxu0 0.0
    %477 = vmatpush1.msra.mxu0 0.0
    %478 = vmatprep.subr.mxu0 0.0
    %479 = vmatpush1.msra.mxu0 0.0
    %480 = vmatprep.subr.mxu0 0.0
    %481 = vmatpush1.msra.mxu0 0.0
    %482 = vmatprep.subr.mxu0 0.0
    %483 = vmatpush1.msra.mxu0 0.0
    %484 = vmatprep.subr.mxu0 0.0
    %485 = vmatpush1.msra.mxu0 0.0
    %486 = vmatprep.subr.mxu0 0.0
    %487 = vmatpush1.msra.mxu0 0.0
    %488 = vmatprep.subr.mxu0 0.0
    %489 = vmatpush1.msra.mxu0 0.0
    %490 = vmatprep.subr.mxu0 0.0
    %491 = vmatpush1.msra.mxu0 0.0
    %492 = vmatprep.subr.mxu0 0.0
    %493 = vmatpush1.msra.mxu0 0.0
    %494 = vmatprep.subr.mxu0 0.0
    %495 = vmatpush1.msra.mxu0 0.0
    %496 = vmatprep.mubr.f32.mxu0 0.0
    %497 = vmatmul.mubr.f32.gmra.mrb[0].mxu0 %v430
    %v498 = vpop.f32.mrb[0].mxu0
    %v499 = vadd.f32 %v427, %v498
    %v500 = vpop.f32.mrb[0].mxu0
    %501 = vdwg.mxu0
    %v502 = vmul.f32 %v419, 1.442695
    %v503 = vpow.pop %v502
    %v504 = vmul.f32 %v142, %v503
    %v505 = vadd.f32 %v504, %v499
    %v506 = vsel %vm224, %v419, 0.0
    %v507 = vrot.slane %v506, 4
    %v508 = vadd.f32 %v506, %v507
    %v509 = vrot.slane %v508, 2
    %v510 = vadd.f32 %v508, %v509
    %v511 = vrot.slane %v510, 1
    %v512 = vadd.f32 %v510, %v511
    %v513 = vadd.f32 %v512, 0.0
    %v514 = vld [vmem:[%s17] sm:$0xff]
    %v515 = vld [vmem:[%s17 + $0x8] sm:$0xff]
    %v516 = vld [vmem:[%s17 + $0x10] sm:$0xff]
    %v517 = vld [vmem:[%s17 + $0x18] sm:$0xff]
    %v518 = vld [vmem:[%s17 + $0x20] sm:$0xff]
    %v519 = vld [vmem:[%s17 + $0x28] sm:$0xff]
    %v520 = vld [vmem:[%s17 + $0x30] sm:$0xff]
    %v521 = vld [vmem:[%s17 + $0x38] sm:$0xff]
    %v522 = vld [vmem:[%s19] sm:$0xff]
    %v523 = vld [vmem:[%s19 + $0x8] sm:$0xff]
    %v524 = vld [vmem:[%s19 + $0x10] sm:$0xff]
    %v525 = vld [vmem:[%s19 + $0x18] sm:$0xff]
    %v526 = vld [vmem:[%s19 + $0x20] sm:$0xff]
    %v527 = vld [vmem:[%s19 + $0x28] sm:$0xff]
    %v528 = vld [vmem:[%s19 + $0x30] sm:$0xff]
    %v529 = vld [vmem:[%s19 + $0x38] sm:$0xff]
    %531 = vset.pattern.permute.xlu0 0
    %532 = vperm.xlu0 %531, %v522
    %v533 = vpop.permute.xlu0 %532
    %536 = vset.pattern.permute.xlu0 0
    %537 = vperm.xlu0 %536, %v523
    %v538 = vpop.permute.xlu0 %537
    %541 = vset.pattern.permute.xlu0 0
    %542 = vperm.xlu0 %541, %v524
    %v543 = vpop.permute.xlu0 %542
    %546 = vset.pattern.permute.xlu0 0
    %547 = vperm.xlu0 %546, %v525
    %v548 = vpop.permute.xlu0 %547
    %551 = vset.pattern.permute.xlu0 0
    %552 = vperm.xlu0 %551, %v526
    %v553 = vpop.permute.xlu0 %552
    %556 = vset.pattern.permute.xlu0 0
    %557 = vperm.xlu0 %556, %v527
    %v558 = vpop.permute.xlu0 %557
    %561 = vset.pattern.permute.xlu0 0
    %562 = vperm.xlu0 %561, %v528
    %v563 = vpop.permute.xlu0 %562
    %566 = vset.pattern.permute.xlu0 0
    %567 = vperm.xlu0 %566, %v529
    %v568 = vpop.permute.xlu0 %567
    %v571 = vsel %vm199, %v514, 0
    %v574 = vsel %vm199, %v515, 0
    %v577 = vsel %vm199, %v516, 0
    %v580 = vsel %vm199, %v517, 0
    %v583 = vsel %vm199, %v518, 0
    %v586 = vsel %vm199, %v519, 0
    %v589 = vsel %vm199, %v520, 0
    %v592 = vsel %vm199, %v521, 0
    %v595 = vsel %vm224, %v505, 0
    %597 = vmatprep.subr.mxu0 0.0
    %598 = vmatpush1.msra.mxu0 %v595
    %599 = vmatprep.subr.mxu0 0.0
    %600 = vmatpush1.msra.mxu0 0.0
    %601 = vmatprep.subr.mxu0 0.0
    %602 = vmatpush1.msra.mxu0 0.0
    %603 = vmatprep.subr.mxu0 0.0
    %604 = vmatpush1.msra.mxu0 0.0
    %605 = vmatprep.subr.mxu0 0.0
    %606 = vmatpush1.msra.mxu0 0.0
    %607 = vmatprep.subr.mxu0 0.0
    %608 = vmatpush1.msra.mxu0 0.0
    %609 = vmatprep.subr.mxu0 0.0
    %610 = vmatpush1.msra.mxu0 0.0
    %611 = vmatprep.subr.mxu0 0.0
    %612 = vmatpush1.msra.mxu0 0.0
    %613 = vmatprep.subr.mxu0 0.0
    %614 = vmatpush1.msra.mxu0 0.0
    %615 = vmatprep.subr.mxu0 0.0
    %616 = vmatpush1.msra.mxu0 0.0
    %617 = vmatprep.subr.mxu0 0.0
    %618 = vmatpush1.msra.mxu0 0.0
    %619 = vmatprep.subr.mxu0 0.0
    %620 = vmatpush1.msra.mxu0 0.0
    %621 = vmatprep.subr.mxu0 0.0
    %622 = vmatpush1.msra.mxu0 0.0
    %623 = vmatprep.subr.mxu0 0.0
    %624 = vmatpush1.msra.mxu0 0.0
    %625 = vmatprep.subr.mxu0 0.0
    %626 = vmatpush1.msra.mxu0 0.0
    %627 = vmatprep.subr.mxu0 0.0
    %628 = vmatpush1.msra.mxu0 0.0
    %629 = vmatprep.subr.mxu0 0.0
    %630 = vmatpush1.msra.mxu0 0.0
    %631 = vmatprep.subr.mxu0 0.0
    %632 = vmatpush1.msra.mxu0 0.0
    %633 = vmatprep.subr.mxu0 0.0
    %634 = vmatpush1.msra.mxu0 0.0
    %635 = vmatprep.subr.mxu0 0.0
    %636 = vmatpush1.msra.mxu0 0.0
    %637 = vmatprep.subr.mxu0 0.0
    %638 = vmatpush1.msra.mxu0 0.0
    %639 = vmatprep.subr.mxu0 0.0
    %640 = vmatpush1.msra.mxu0 0.0
    %641 = vmatprep.subr.mxu0 0.0
    %642 = vmatpush1.msra.mxu0 0.0
    %643 = vmatprep.subr.mxu0 0.0
    %644 = vmatpush1.msra.mxu0 0.0
    %645 = vmatprep.subr.mxu0 0.0
    %646 = vmatpush1.msra.mxu0 0.0
    %647 = vmatprep.subr.mxu0 0.0
    %648 = vmatpush1.msra.mxu0 0.0
    %649 = vmatprep.subr.mxu0 0.0
    %650 = vmatpush1.msra.mxu0 0.0
    %651 = vmatprep.subr.mxu0 0.0
    %652 = vmatpush1.msra.mxu0 0.0
    %653 = vmatprep.subr.mxu0 0.0
    %654 = vmatpush1.msra.mxu0 0.0
    %655 = vmatprep.subr.mxu0 0.0
    %656 = vmatpush1.msra.mxu0 0.0
    %657 = vmatprep.subr.mxu0 0.0
    %658 = vmatpush1.msra.mxu0 0.0
    %659 = vmatprep.subr.mxu0 0.0
    %660 = vmatpush1.msra.mxu0 0.0
    %661 = vmatprep.mubr.f32.mxu0 0.0
    %662 = vmatmul.mubr.f32.gmra.mrb[0].mxu0 %v571
    %v663 = vpop.f32.mrb[0].mxu0
    %v664 = vadd.f32 %v533, %v663
    %v665 = vpop.f32.mrb[0].mxu0
    %666 = vmatprep.mubr.f32.mxu0 0.0
    %667 = vmatmul.mubr.f32.gmra.mrb[0].mxu0 %v574
    %v668 = vpop.f32.mrb[0].mxu0
    %v669 = vadd.f32 %v538, %v668
    %v670 = vpop.f32.mrb[0].mxu0
    %671 = vmatprep.mubr.f32.mxu0 0.0
    %672 = vmatmul.mubr.f32.gmra.mrb[0].mxu0 %v577
    %v673 = vpop.f32.mrb[0].mxu0
    %v674 = vadd.f32 %v543, %v673
    %v675 = vpop.f32.mrb[0].mxu0
    %676 = vmatprep.mubr.f32.mxu0 0.0
    %677 = vmatmul.mubr.f32.gmra.mrb[0].mxu0 %v580
    %v678 = vpop.f32.mrb[0].mxu0
    %v679 = vadd.f32 %v548, %v678
    %v680 = vpop.f32.mrb[0].mxu0
    %681 = vmatprep.mubr.f32.mxu0 0.0
    %682 = vmatmul.mubr.f32.gmra.mrb[0].mxu0 %v583
    %v683 = vpop.f32.mrb[0].mxu0
    %v684 = vadd.f32 %v553, %v683
    %v685 = vpop.f32.mrb[0].mxu0
    %686 = vmatprep.mubr.f32.mxu0 0.0
    %687 = vmatmul.mubr.f32.gmra.mrb[0].mxu0 %v586
    %v688 = vpop.f32.mrb[0].mxu0
    %v689 = vadd.f32 %v558, %v688
    %v690 = vpop.f32.mrb[0].mxu0
    %691 = vmatprep.mubr.f32.mxu0 0.0
    %692 = vmatmul.mubr.f32.gmra.mrb[0].mxu0 %v589
    %v693 = vpop.f32.mrb[0].mxu0
    %v694 = vadd.f32 %v563, %v693
    %v695 = vpop.f32.mrb[0].mxu0
    %696 = vmatprep.mubr.f32.mxu0 0.0
    %697 = vmatmul.mubr.f32.gmra.mrb[0].mxu0 %v592
    %v698 = vpop.f32.mrb[0].mxu0
    %v699 = vadd.f32 %v568, %v698
    %v700 = vpop.f32.mrb[0].mxu0
    %701 = vdwg.mxu0
    %v702 = vtanh.pop %v664
    %v703 = vtanh.pop %v669
    %v704 = vtanh.pop %v674
    %v705 = vtanh.pop %v679
    %v706 = vmax.f32 %v684, 0.0
    %v707 = vmax.f32 %v689, 0.0
    %v708 = vmax.f32 %v694, 0.0
    %v709 = vmax.f32 %v699, 0.0
    %v710 = vld [vmem:[%s21] sm:$0xf]
    %v711 = vld [vmem:[%s23] sm:$0xf]
    %713 = vset.pattern.permute.xlu0 0
    %714 = vperm.xlu0 %713, %v711
    %v715 = vpop.permute.xlu0 %714
    %v718 = vsel %vm348, %v710, 0
    %720 = vmatprep.subr.mxu0 0.0
    %721 = vmatpush1.msra.mxu0 %v702
    %722 = vmatprep.subr.mxu0 0.0
    %723 = vmatpush1.msra.mxu0 %v703
    %724 = vmatprep.subr.mxu0 0.0
    %725 = vmatpush1.msra.mxu0 %v704
    %726 = vmatprep.subr.mxu0 0.0
    %727 = vmatpush1.msra.mxu0 %v705
    %728 = vmatprep.subr.mxu0 0.0
    %729 = vmatpush1.msra.mxu0 0.0
    %730 = vmatprep.subr.mxu0 0.0
    %731 = vmatpush1.msra.mxu0 0.0
    %732 = vmatprep.subr.mxu0 0.0
    %733 = vmatpush1.msra.mxu0 0.0
    %734 = vmatprep.subr.mxu0 0.0
    %735 = vmatpush1.msra.mxu0 0.0
    %736 = vmatprep.subr.mxu0 0.0
    %737 = vmatpush1.msra.mxu0 0.0
    %738 = vmatprep.subr.mxu0 0.0
    %739 = vmatpush1.msra.mxu0 0.0
    %740 = vmatprep.subr.mxu0 0.0
    %741 = vmatpush1.msra.mxu0 0.0
    %742 = vmatprep.subr.mxu0 0.0
    %743 = vmatpush1.msra.mxu0 0.0
    %744 = vmatprep.subr.mxu0 0.0
    %745 = vmatpush1.msra.mxu0 0.0
    %746 = vmatprep.subr.mxu0 0.0
    %747 = vmatpush1.msra.mxu0 0.0
    %748 = vmatprep.subr.mxu0 0.0
    %749 = vmatpush1.msra.mxu0 0.0
    %750 = vmatprep.subr.mxu0 0.0
    %751 = vmatpush1.msra.mxu0 0.0
    %752 = vmatprep.subr.mxu0 0.0
    %753 = vmatpush1.msra.mxu0 0.0
    %754 = vmatprep.subr.mxu0 0.0
    %755 = vmatpush1.msra.mxu0 0.0
    %756 = vmatprep.subr.mxu0 0.0
    %757 = vmatpush1.msra.mxu0 0.0
    %758 = vmatprep.subr.mxu0 0.0
    %759 = vmatpush1.msra.mxu0 0.0
    %760 = vmatprep.subr.mxu0 0.0
    %761 = vmatpush1.msra.mxu0 0.0
    %762 = vmatprep.subr.mxu0 0.0
    %763 = vmatpush1.msra.mxu0 0.0
    %764 = vmatprep.subr.mxu0 0.0
    %765 = vmatpush1.msra.mxu0 0.0
    %766 = vmatprep.subr.mxu0 0.0
    %767 = vmatpush1.msra.mxu0 0.0
    %768 = vmatprep.subr.mxu0 0.0
    %769 = vmatpush1.msra.mxu0 0.0
    %770 = vmatprep.subr.mxu0 0.0
    %771 = vmatpush1.msra.mxu0 0.0
    %772 = vmatprep.subr.mxu0 0.0
    %773 = vmatpush1.msra.mxu0 0.0
    %774 = vmatprep.subr.mxu0 0.0
    %775 = vmatpush1.msra.mxu0 0.0
    %776 = vmatprep.subr.mxu0 0.0
    %777 = vmatpush1.msra.mxu0 0.0
    %778 = vmatprep.subr.mxu0 0.0
    %779 = vmatpush1.msra.mxu0 0.0
    %780 = vmatprep.subr.mxu0 0.0
    %781 = vmatpush1.msra.mxu0 0.0
    %782 = vmatprep.subr.mxu0 0.0
    %783 = vmatpush1.msra.mxu0 0.0
    %784 = vmatprep.mubr.f32.mxu0 0.0
    %785 = vmatmul.mubr.f32.gmra.mrb[0].mxu0 %v718
    %v786 = vpop.f32.mrb[0].mxu0
    %v787 = vadd.f32 %v715, %v786
    %v788 = vpop.f32.mrb[0].mxu0
    %789 = vdwg.mxu0
    %v790 = vld [vmem:[%s25] sm:$0xf]
    %v791 = vld [vmem:[%s27] sm:$0xf]
    %793 = vset.pattern.permute.xlu0 0
    %794 = vperm.xlu0 %793, %v791
    %v795 = vpop.permute.xlu0 %794
    %v798 = vsel %vm348, %v790, 0
    %800 = vmatprep.subr.mxu0 0.0
    %801 = vmatpush1.msra.mxu0 %v706
    %802 = vmatprep.subr.mxu0 0.0
    %803 = vmatpush1.msra.mxu0 %v707
    %804 = vmatprep.subr.mxu0 0.0
    %805 = vmatpush1.msra.mxu0 %v708
    %806 = vmatprep.subr.mxu0 0.0
    %807 = vmatpush1.msra.mxu0 %v709
    %808 = vmatprep.subr.mxu0 0.0
    %809 = vmatpush1.msra.mxu0 0.0
    %810 = vmatprep.subr.mxu0 0.0
    %811 = vmatpush1.msra.mxu0 0.0
    %812 = vmatprep.subr.mxu0 0.0
    %813 = vmatpush1.msra.mxu0 0.0
    %814 = vmatprep.subr.mxu0 0.0
    %815 = vmatpush1.msra.mxu0 0.0
    %816 = vmatprep.subr.mxu0 0.0
    %817 = vmatpush1.msra.mxu0 0.0
    %818 = vmatprep.subr.mxu0 0.0
    %819 = vmatpush1.msra.mxu0 0.0
    %820 = vmatprep.subr.mxu0 0.0
    %821 = vmatpush1.msra.mxu0 0.0
    %822 = vmatprep.subr.mxu0 0.0
    %823 = vmatpush1.msra.mxu0 0.0
    %824 = vmatprep.subr.mxu0 0.0
    %825 = vmatpush1.msra.mxu0 0.0
    %826 = vmatprep.subr.mxu0 0.0
    %827 = vmatpush1.msra.mxu0 0.0
    %828 = vmatprep.subr.mxu0 0.0
    %829 = vmatpush1.msra.mxu0 0.0
    %830 = vmatprep.subr.mxu0 0.0
    %831 = vmatpush1.msra.mxu0 0.0
    %832 = vmatprep.subr.mxu0 0.0
    %833 = vmatpush1.msra.mxu0 0.0
    %834 = vmatprep.subr.mxu0 0.0
    %835 = vmatpush1.msra.mxu0 0.0
    %836 = vmatprep.subr.mxu0 0.0
    %837 = vmatpush1.msra.mxu0 0.0
    %838 = vmatprep.subr.mxu0 0.0
    %839 = vmatpush1.msra.mxu0 0.0
    %840 = vmatprep.subr.mxu0 0.0
    %841 = vmatpush1.msra.mxu0 0.0
    %842 = vmatprep.subr.mxu0 0.0
    %843 = vmatpush1.msra.mxu0 0.0
    %844 = vmatprep.subr.mxu0 0.0
    %845 = vmatpush1.msra.mxu0 0.0
    %846 = vmatprep.subr.mxu0 0.0
    %847 = vmatpush1.msra.mxu0 0.0
    %848 = vmatprep.subr.mxu0 0.0
    %849 = vmatpush1.msra.mxu0 0.0
    %850 = vmatprep.subr.mxu0 0.0
    %851 = vmatpush1.msra.mxu0 0.0
    %852 = vmatprep.subr.mxu0 0.0
    %853 = vmatpush1.msra.mxu0 0.0
    %854 = vmatprep.subr.mxu0 0.0
    %855 = vmatpush1.msra.mxu0 0.0
    %856 = vmatprep.subr.mxu0 0.0
    %857 = vmatpush1.msra.mxu0 0.0
    %858 = vmatprep.subr.mxu0 0.0
    %859 = vmatpush1.msra.mxu0 0.0
    %860 = vmatprep.subr.mxu0 0.0
    %861 = vmatpush1.msra.mxu0 0.0
    %862 = vmatprep.subr.mxu0 0.0
    %863 = vmatpush1.msra.mxu0 0.0
    %864 = vmatprep.mubr.f32.mxu0 0.0
    %865 = vmatmul.mubr.f32.gmra.mrb[0].mxu0 %v798
    %v866 = vpop.f32.mrb[0].mxu0
    %v867 = vadd.f32 %v795, %v866
    %v868 = vpop.f32.mrb[0].mxu0
    %869 = vdwg.mxu0
    %v870 = vmul.f32 %v787, 1.442695
    %v871 = vpow.pop %v870
    %v872 = vmul.f32 %v141, %v871
    %v873 = vadd.f32 %v872, %v867
    %v874 = vsel %vm224, %v787, 0.0
    %v875 = vrot.slane %v874, 4
    %v876 = vadd.f32 %v874, %v875
    %v877 = vrot.slane %v876, 2
    %v878 = vadd.f32 %v876, %v877
    %v879 = vrot.slane %v878, 1
    %v880 = vadd.f32 %v878, %v879
    %v881 = vadd.f32 %v513, %v880
    %v882 = vld [vmem:[%s29] sm:$0xff]
    %v883 = vld [vmem:[%s29 + $0x8] sm:$0xff]
    %v884 = vld [vmem:[%s29 + $0x10] sm:$0xff]
    %v885 = vld [vmem:[%s29 + $0x18] sm:$0xff]
    %v886 = vld [vmem:[%s29 + $0x20] sm:$0xff]
    %v887 = vld [vmem:[%s29 + $0x28] sm:$0xff]
    %v888 = vld [vmem:[%s29 + $0x30] sm:$0xff]
    %v889 = vld [vmem:[%s29 + $0x38] sm:$0xff]
    %v890 = vld [vmem:[%s31] sm:$0xff]
    %v891 = vld [vmem:[%s31 + $0x8] sm:$0xff]
    %v892 = vld [vmem:[%s31 + $0x10] sm:$0xff]
    %v893 = vld [vmem:[%s31 + $0x18] sm:$0xff]
    %v894 = vld [vmem:[%s31 + $0x20] sm:$0xff]
    %v895 = vld [vmem:[%s31 + $0x28] sm:$0xff]
    %v896 = vld [vmem:[%s31 + $0x30] sm:$0xff]
    %v897 = vld [vmem:[%s31 + $0x38] sm:$0xff]
    %899 = vset.pattern.permute.xlu0 0
    %900 = vperm.xlu0 %899, %v890
    %v901 = vpop.permute.xlu0 %900
    %904 = vset.pattern.permute.xlu0 0
    %905 = vperm.xlu0 %904, %v891
    %v906 = vpop.permute.xlu0 %905
    %909 = vset.pattern.permute.xlu0 0
    %910 = vperm.xlu0 %909, %v892
    %v911 = vpop.permute.xlu0 %910
    %914 = vset.pattern.permute.xlu0 0
    %915 = vperm.xlu0 %914, %v893
    %v916 = vpop.permute.xlu0 %915
    %919 = vset.pattern.permute.xlu0 0
    %920 = vperm.xlu0 %919, %v894
    %v921 = vpop.permute.xlu0 %920
    %924 = vset.pattern.permute.xlu0 0
    %925 = vperm.xlu0 %924, %v895
    %v926 = vpop.permute.xlu0 %925
    %929 = vset.pattern.permute.xlu0 0
    %930 = vperm.xlu0 %929, %v896
    %v931 = vpop.permute.xlu0 %930
    %934 = vset.pattern.permute.xlu0 0
    %935 = vperm.xlu0 %934, %v897
    %v936 = vpop.permute.xlu0 %935
    %v939 = vsel %vm199, %v882, 0
    %v942 = vsel %vm199, %v883, 0
    %v945 = vsel %vm199, %v884, 0
    %v948 = vsel %vm199, %v885, 0
    %v951 = vsel %vm199, %v886, 0
    %v954 = vsel %vm199, %v887, 0
    %v957 = vsel %vm199, %v888, 0
    %v960 = vsel %vm199, %v889, 0
    %v963 = vsel %vm224, %v873, 0
    %965 = vmatprep.subr.mxu0 0.0
    %966 = vmatpush1.msra.mxu0 %v963
    %967 = vmatprep.subr.mxu0 0.0
    %968 = vmatpush1.msra.mxu0 0.0
    %969 = vmatprep.subr.mxu0 0.0
    %970 = vmatpush1.msra.mxu0 0.0
    %971 = vmatprep.subr.mxu0 0.0
    %972 = vmatpush1.msra.mxu0 0.0
    %973 = vmatprep.subr.mxu0 0.0
    %974 = vmatpush1.msra.mxu0 0.0
    %975 = vmatprep.subr.mxu0 0.0
    %976 = vmatpush1.msra.mxu0 0.0
    %977 = vmatprep.subr.mxu0 0.0
    %978 = vmatpush1.msra.mxu0 0.0
    %979 = vmatprep.subr.mxu0 0.0
    %980 = vmatpush1.msra.mxu0 0.0
    %981 = vmatprep.subr.mxu0 0.0
    %982 = vmatpush1.msra.mxu0 0.0
    %983 = vmatprep.subr.mxu0 0.0
    %984 = vmatpush1.msra.mxu0 0.0
    %985 = vmatprep.subr.mxu0 0.0
    %986 = vmatpush1.msra.mxu0 0.0
    %987 = vmatprep.subr.mxu0 0.0
    %988 = vmatpush1.msra.mxu0 0.0
    %989 = vmatprep.subr.mxu0 0.0
    %990 = vmatpush1.msra.mxu0 0.0
    %991 = vmatprep.subr.mxu0 0.0
    %992 = vmatpush1.msra.mxu0 0.0
    %993 = vmatprep.subr.mxu0 0.0
    %994 = vmatpush1.msra.mxu0 0.0
    %995 = vmatprep.subr.mxu0 0.0
    %996 = vmatpush1.msra.mxu0 0.0
    %997 = vmatprep.subr.mxu0 0.0
    %998 = vmatpush1.msra.mxu0 0.0
    %999 = vmatprep.subr.mxu0 0.0
    %1000 = vmatpush1.msra.mxu0 0.0
    %1001 = vmatprep.subr.mxu0 0.0
    %1002 = vmatpush1.msra.mxu0 0.0
    %1003 = vmatprep.subr.mxu0 0.0
    %1004 = vmatpush1.msra.mxu0 0.0
    %1005 = vmatprep.subr.mxu0 0.0
    %1006 = vmatpush1.msra.mxu0 0.0
    %1007 = vmatprep.subr.mxu0 0.0
    %1008 = vmatpush1.msra.mxu0 0.0
    %1009 = vmatprep.subr.mxu0 0.0
    %1010 = vmatpush1.msra.mxu0 0.0
    %1011 = vmatprep.subr.mxu0 0.0
    %1012 = vmatpush1.msra.mxu0 0.0
    %1013 = vmatprep.subr.mxu0 0.0
    %1014 = vmatpush1.msra.mxu0 0.0
    %1015 = vmatprep.subr.mxu0 0.0
    %1016 = vmatpush1.msra.mxu0 0.0
    %1017 = vmatprep.subr.mxu0 0.0
    %1018 = vmatpush1.msra.mxu0 0.0
    %1019 = vmatprep.subr.mxu0 0.0
    %1020 = vmatpush1.msra.mxu0 0.0
    %1021 = vmatprep.subr.mxu0 0.0
    %1022 = vmatpush1.msra.mxu0 0.0
    %1023 = vmatprep.subr.mxu0 0.0
    %1024 = vmatpush1.msra.mxu0 0.0
    %1025 = vmatprep.subr.mxu0 0.0
    %1026 = vmatpush1.msra.mxu0 0.0
    %1027 = vmatprep.subr.mxu0 0.0
    %1028 = vmatpush1.msra.mxu0 0.0
    %1029 = vmatprep.mubr.f32.mxu0 0.0
    %1030 = vmatmul.mubr.f32.gmra.mrb[0].mxu0 %v939
    %v1031 = vpop.f32.mrb[0].mxu0
    %v1032 = vadd.f32 %v901, %v1031
    %v1033 = vpop.f32.mrb[0].mxu0
    %1034 = vmatprep.mubr.f32.mxu0 0.0
    %1035 = vmatmul.mubr.f32.gmra.mrb[0].mxu0 %v942
    %v1036 = vpop.f32.mrb[0].mxu0
    %v1037 = vadd.f32 %v906, %v1036
    %v1038 = vpop.f32.mrb[0].mxu0
    %1039 = vmatprep.mubr.f32.mxu0 0.0
    %1040 = vmatmul.mubr.f32.gmra.mrb[0].mxu0 %v945
    %v1041 = vpop.f32.mrb[0].mxu0
    %v1042 = vadd.f32 %v911, %v1041
    %v1043 = vpop.f32.mrb[0].mxu0
    %1044 = vmatprep.mubr.f32.mxu0 0.0
    %1045 = vmatmul.mubr.f32.gmra.mrb[0].mxu0 %v948
    %v1046 = vpop.f32.mrb[0].mxu0
    %v1047 = vadd.f32 %v916, %v1046
    %v1048 = vpop.f32.mrb[0].mxu0
    %1049 = vmatprep.mubr.f32.mxu0 0.0
    %1050 = vmatmul.mubr.f32.gmra.mrb[0].mxu0 %v951
    %v1051 = vpop.f32.mrb[0].mxu0
    %v1052 = vadd.f32 %v921, %v1051
    %v1053 = vpop.f32.mrb[0].mxu0
    %1054 = vmatprep.mubr.f32.mxu0 0.0
    %1055 = vmatmul.mubr.f32.gmra.mrb[0].mxu0 %v954
    %v1056 = vpop.f32.mrb[0].mxu0
    %v1057 = vadd.f32 %v926, %v1056
    %v1058 = vpop.f32.mrb[0].mxu0
    %1059 = vmatprep.mubr.f32.mxu0 0.0
    %1060 = vmatmul.mubr.f32.gmra.mrb[0].mxu0 %v957
    %v1061 = vpop.f32.mrb[0].mxu0
    %v1062 = vadd.f32 %v931, %v1061
    %v1063 = vpop.f32.mrb[0].mxu0
    %1064 = vmatprep.mubr.f32.mxu0 0.0
    %1065 = vmatmul.mubr.f32.gmra.mrb[0].mxu0 %v960
    %v1066 = vpop.f32.mrb[0].mxu0
    %v1067 = vadd.f32 %v936, %v1066
    %v1068 = vpop.f32.mrb[0].mxu0
    %1069 = vdwg.mxu0
    %v1070 = vtanh.pop %v1032
    %v1071 = vtanh.pop %v1037
    %v1072 = vtanh.pop %v1042
    %v1073 = vtanh.pop %v1047
    %v1074 = vmax.f32 %v1052, 0.0
    %v1075 = vmax.f32 %v1057, 0.0
    %v1076 = vmax.f32 %v1062, 0.0
    %v1077 = vmax.f32 %v1067, 0.0
    %v1078 = vld [vmem:[%s33] sm:$0xf]
    %v1079 = vld [vmem:[%s35] sm:$0xf]
    %1081 = vset.pattern.permute.xlu0 0
    %1082 = vperm.xlu0 %1081, %v1079
    %v1083 = vpop.permute.xlu0 %1082
    %v1086 = vsel %vm348, %v1078, 0
    %1088 = vmatprep.subr.mxu0 0.0
    %1089 = vmatpush1.msra.mxu0 %v1070
    %1090 = vmatprep.subr.mxu0 0.0
    %1091 = vmatpush1.msra.mxu0 %v1071
    %1092 = vmatprep.subr.mxu0 0.0
    %1093 = vmatpush1.msra.mxu0 %v1072
    %1094 = vmatprep.subr.mxu0 0.0
    %1095 = vmatpush1.msra.mxu0 %v1073
    %1096 = vmatprep.subr.mxu0 0.0
    %1097 = vmatpush1.msra.mxu0 0.0
    %1098 = vmatprep.subr.mxu0 0.0
    %1099 = vmatpush1.msra.mxu0 0.0
    %1100 = vmatprep.subr.mxu0 0.0
    %1101 = vmatpush1.msra.mxu0 0.0
    %1102 = vmatprep.subr.mxu0 0.0
    %1103 = vmatpush1.msra.mxu0 0.0
    %1104 = vmatprep.subr.mxu0 0.0
    %1105 = vmatpush1.msra.mxu0 0.0
    %1106 = vmatprep.subr.mxu0 0.0
    %1107 = vmatpush1.msra.mxu0 0.0
    %1108 = vmatprep.subr.mxu0 0.0
    %1109 = vmatpush1.msra.mxu0 0.0
    %1110 = vmatprep.subr.mxu0 0.0
    %1111 = vmatpush1.msra.mxu0 0.0
    %1112 = vmatprep.subr.mxu0 0.0
    %1113 = vmatpush1.msra.mxu0 0.0
    %1114 = vmatprep.subr.mxu0 0.0
    %1115 = vmatpush1.msra.mxu0 0.0
    %1116 = vmatprep.subr.mxu0 0.0
    %1117 = vmatpush1.msra.mxu0 0.0
    %1118 = vmatprep.subr.mxu0 0.0
    %1119 = vmatpush1.msra.mxu0 0.0
    %1120 = vmatprep.subr.mxu0 0.0
    %1121 = vmatpush1.msra.mxu0 0.0
    %1122 = vmatprep.subr.mxu0 0.0
    %1123 = vmatpush1.msra.mxu0 0.0
    %1124 = vmatprep.subr.mxu0 0.0
    %1125 = vmatpush1.msra.mxu0 0.0
    %1126 = vmatprep.subr.mxu0 0.0
    %1127 = vmatpush1.msra.mxu0 0.0
    %1128 = vmatprep.subr.mxu0 0.0
    %1129 = vmatpush1.msra.mxu0 0.0
    %1130 = vmatprep.subr.mxu0 0.0
    %1131 = vmatpush1.msra.mxu0 0.0
    %1132 = vmatprep.subr.mxu0 0.0
    %1133 = vmatpush1.msra.mxu0 0.0
    %1134 = vmatprep.subr.mxu0 0.0
    %1135 = vmatpush1.msra.mxu0 0.0
    %1136 = vmatprep.subr.mxu0 0.0
    %1137 = vmatpush1.msra.mxu0 0.0
    %1138 = vmatprep.subr.mxu0 0.0
    %1139 = vmatpush1.msra.mxu0 0.0
    %1140 = vmatprep.subr.mxu0 0.0
    %1141 = vmatpush1.msra.mxu0 0.0
    %1142 = vmatprep.subr.mxu0 0.0
    %1143 = vmatpush1.msra.mxu0 0.0
    %1144 = vmatprep.subr.mxu0 0.0
    %1145 = vmatpush1.msra.mxu0 0.0
    %1146 = vmatprep.subr.mxu0 0.0
    %1147 = vmatpush1.msra.mxu0 0.0
    %1148 = vmatprep.subr.mxu0 0.0
    %1149 = vmatpush1.msra.mxu0 0.0
    %1150 = vmatprep.subr.mxu0 0.0
    %1151 = vmatpush1.msra.mxu0 0.0
    %1152 = vmatprep.mubr.f32.mxu0 0.0
    %1153 = vmatmul.mubr.f32.gmra.mrb[0].mxu0 %v1086
    %v1154 = vpop.f32.mrb[0].mxu0
    %v1155 = vadd.f32 %v1083, %v1154
    %v1156 = vpop.f32.mrb[0].mxu0
    %1157 = vdwg.mxu0
    %v1158 = vld [vmem:[%s37] sm:$0xf]
    %v1159 = vld [vmem:[%s39] sm:$0xf]
    %1161 = vset.pattern.permute.xlu0 0
    %1162 = vperm.xlu0 %1161, %v1159
    %v1163 = vpop.permute.xlu0 %1162
    %v1166 = vsel %vm348, %v1158, 0
    %1168 = vmatprep.subr.mxu0 0.0
    %1169 = vmatpush1.msra.mxu0 %v1074
    %1170 = vmatprep.subr.mxu0 0.0
    %1171 = vmatpush1.msra.mxu0 %v1075
    %1172 = vmatprep.subr.mxu0 0.0
    %1173 = vmatpush1.msra.mxu0 %v1076
    %1174 = vmatprep.subr.mxu0 0.0
    %1175 = vmatpush1.msra.mxu0 %v1077
    %1176 = vmatprep.subr.mxu0 0.0
    %1177 = vmatpush1.msra.mxu0 0.0
    %1178 = vmatprep.subr.mxu0 0.0
    %1179 = vmatpush1.msra.mxu0 0.0
    %1180 = vmatprep.subr.mxu0 0.0
    %1181 = vmatpush1.msra.mxu0 0.0
    %1182 = vmatprep.subr.mxu0 0.0
    %1183 = vmatpush1.msra.mxu0 0.0
    %1184 = vmatprep.subr.mxu0 0.0
    %1185 = vmatpush1.msra.mxu0 0.0
    %1186 = vmatprep.subr.mxu0 0.0
    %1187 = vmatpush1.msra.mxu0 0.0
    %1188 = vmatprep.subr.mxu0 0.0
    %1189 = vmatpush1.msra.mxu0 0.0
    %1190 = vmatprep.subr.mxu0 0.0
    %1191 = vmatpush1.msra.mxu0 0.0
    %1192 = vmatprep.subr.mxu0 0.0
    %1193 = vmatpush1.msra.mxu0 0.0
    %1194 = vmatprep.subr.mxu0 0.0
    %1195 = vmatpush1.msra.mxu0 0.0
    %1196 = vmatprep.subr.mxu0 0.0
    %1197 = vmatpush1.msra.mxu0 0.0
    %1198 = vmatprep.subr.mxu0 0.0
    %1199 = vmatpush1.msra.mxu0 0.0
    %1200 = vmatprep.subr.mxu0 0.0
    %1201 = vmatpush1.msra.mxu0 0.0
    %1202 = vmatprep.subr.mxu0 0.0
    %1203 = vmatpush1.msra.mxu0 0.0
    %1204 = vmatprep.subr.mxu0 0.0
    %1205 = vmatpush1.msra.mxu0 0.0
    %1206 = vmatprep.subr.mxu0 0.0
    %1207 = vmatpush1.msra.mxu0 0.0
    %1208 = vmatprep.subr.mxu0 0.0
    %1209 = vmatpush1.msra.mxu0 0.0
    %1210 = vmatprep.subr.mxu0 0.0
    %1211 = vmatpush1.msra.mxu0 0.0
    %1212 = vmatprep.subr.mxu0 0.0
    %1213 = vmatpush1.msra.mxu0 0.0
    %1214 = vmatprep.subr.mxu0 0.0
    %1215 = vmatpush1.msra.mxu0 0.0
    %1216 = vmatprep.subr.mxu0 0.0
    %1217 = vmatpush1.msra.mxu0 0.0
    %1218 = vmatprep.subr.mxu0 0.0
    %1219 = vmatpush1.msra.mxu0 0.0
    %1220 = vmatprep.subr.mxu0 0.0
    %1221 = vmatpush1.msra.mxu0 0.0
    %1222 = vmatprep.subr.mxu0 0.0
    %1223 = vmatpush1.msra.mxu0 0.0
    %1224 = vmatprep.subr.mxu0 0.0
    %1225 = vmatpush1.msra.mxu0 0.0
    %1226 = vmatprep.subr.mxu0 0.0
    %1227 = vmatpush1.msra.mxu0 0.0
    %1228 = vmatprep.subr.mxu0 0.0
    %1229 = vmatpush1.msra.mxu0 0.0
    %1230 = vmatprep.subr.mxu0 0.0
    %1231 = vmatpush1.msra.mxu0 0.0
    %1232 = vmatprep.mubr.f32.mxu0 0.0
    %1233 = vmatmul.mubr.f32.gmra.mrb[0].mxu0 %v1166
    %v1234 = vpop.f32.mrb[0].mxu0
    %v1235 = vadd.f32 %v1163, %v1234
    %v1236 = vpop.f32.mrb[0].mxu0
    %1237 = vdwg.mxu0
    %v1238 = vmul.f32 %v1155, 1.442695
    %v1239 = vpow.pop %v1238
    %v1240 = vmul.f32 %v505, %v1239
    %v1241 = vadd.f32 %v1240, %v1235
    %v1242 = vsel %vm224, %v1155, 0.0
    %v1243 = vrot.slane %v1242, 4
    %v1244 = vadd.f32 %v1242, %v1243
    %v1245 = vrot.slane %v1244, 2
    %v1246 = vadd.f32 %v1244, %v1245
    %v1247 = vrot.slane %v1246, 1
    %v1248 = vadd.f32 %v1246, %v1247
    %v1249 = vadd.f32 %v881, %v1248
    %v1250 = vld [vmem:[%s41] sm:$0xff]
    %v1251 = vld [vmem:[%s41 + $0x8] sm:$0xff]
    %v1252 = vld [vmem:[%s41 + $0x10] sm:$0xff]
    %v1253 = vld [vmem:[%s41 + $0x18] sm:$0xff]
    %v1254 = vld [vmem:[%s41 + $0x20] sm:$0xff]
    %v1255 = vld [vmem:[%s41 + $0x28] sm:$0xff]
    %v1256 = vld [vmem:[%s41 + $0x30] sm:$0xff]
    %v1257 = vld [vmem:[%s41 + $0x38] sm:$0xff]
    %v1258 = vld [vmem:[%s43] sm:$0xff]
    %v1259 = vld [vmem:[%s43 + $0x8] sm:$0xff]
    %v1260 = vld [vmem:[%s43 + $0x10] sm:$0xff]
    %v1261 = vld [vmem:[%s43 + $0x18] sm:$0xff]
    %v1262 = vld [vmem:[%s43 + $0x20] sm:$0xff]
    %v1263 = vld [vmem:[%s43 + $0x28] sm:$0xff]
    %v1264 = vld [vmem:[%s43 + $0x30] sm:$0xff]
    %v1265 = vld [vmem:[%s43 + $0x38] sm:$0xff]
    %1267 = vset.pattern.permute.xlu0 0
    %1268 = vperm.xlu0 %1267, %v1258
    %v1269 = vpop.permute.xlu0 %1268
    %1272 = vset.pattern.permute.xlu0 0
    %1273 = vperm.xlu0 %1272, %v1259
    %v1274 = vpop.permute.xlu0 %1273
    %1277 = vset.pattern.permute.xlu0 0
    %1278 = vperm.xlu0 %1277, %v1260
    %v1279 = vpop.permute.xlu0 %1278
    %1282 = vset.pattern.permute.xlu0 0
    %1283 = vperm.xlu0 %1282, %v1261
    %v1284 = vpop.permute.xlu0 %1283
    %1287 = vset.pattern.permute.xlu0 0
    %1288 = vperm.xlu0 %1287, %v1262
    %v1289 = vpop.permute.xlu0 %1288
    %1292 = vset.pattern.permute.xlu0 0
    %1293 = vperm.xlu0 %1292, %v1263
    %v1294 = vpop.permute.xlu0 %1293
    %1297 = vset.pattern.permute.xlu0 0
    %1298 = vperm.xlu0 %1297, %v1264
    %v1299 = vpop.permute.xlu0 %1298
    %1302 = vset.pattern.permute.xlu0 0
    %1303 = vperm.xlu0 %1302, %v1265
    %v1304 = vpop.permute.xlu0 %1303
    %v1307 = vsel %vm199, %v1250, 0
    %v1310 = vsel %vm199, %v1251, 0
    %v1313 = vsel %vm199, %v1252, 0
    %v1316 = vsel %vm199, %v1253, 0
    %v1319 = vsel %vm199, %v1254, 0
    %v1322 = vsel %vm199, %v1255, 0
    %v1325 = vsel %vm199, %v1256, 0
    %v1328 = vsel %vm199, %v1257, 0
    %v1331 = vsel %vm224, %v1241, 0
    %1333 = vmatprep.subr.mxu0 0.0
    %1334 = vmatpush1.msra.mxu0 %v1331
    %1335 = vmatprep.subr.mxu0 0.0
    %1336 = vmatpush1.msra.mxu0 0.0
    %1337 = vmatprep.subr.mxu0 0.0
    %1338 = vmatpush1.msra.mxu0 0.0
    %1339 = vmatprep.subr.mxu0 0.0
    %1340 = vmatpush1.msra.mxu0 0.0
    %1341 = vmatprep.subr.mxu0 0.0
    %1342 = vmatpush1.msra.mxu0 0.0
    %1343 = vmatprep.subr.mxu0 0.0
    %1344 = vmatpush1.msra.mxu0 0.0
    %1345 = vmatprep.subr.mxu0 0.0
    %1346 = vmatpush1.msra.mxu0 0.0
    %1347 = vmatprep.subr.mxu0 0.0
    %1348 = vmatpush1.msra.mxu0 0.0
    %1349 = vmatprep.subr.mxu0 0.0
    %1350 = vmatpush1.msra.mxu0 0.0
    %1351 = vmatprep.subr.mxu0 0.0
    %1352 = vmatpush1.msra.mxu0 0.0
    %1353 = vmatprep.subr.mxu0 0.0
    %1354 = vmatpush1.msra.mxu0 0.0
    %1355 = vmatprep.subr.mxu0 0.0
    %1356 = vmatpush1.msra.mxu0 0.0
    %1357 = vmatprep.subr.mxu0 0.0
    %1358 = vmatpush1.msra.mxu0 0.0
    %1359 = vmatprep.subr.mxu0 0.0
    %1360 = vmatpush1.msra.mxu0 0.0
    %1361 = vmatprep.subr.mxu0 0.0
    %1362 = vmatpush1.msra.mxu0 0.0
    %1363 = vmatprep.subr.mxu0 0.0
    %1364 = vmatpush1.msra.mxu0 0.0
    %1365 = vmatprep.subr.mxu0 0.0
    %1366 = vmatpush1.msra.mxu0 0.0
    %1367 = vmatprep.subr.mxu0 0.0
    %1368 = vmatpush1.msra.mxu0 0.0
    %1369 = vmatprep.subr.mxu0 0.0
    %1370 = vmatpush1.msra.mxu0 0.0
    %1371 = vmatprep.subr.mxu0 0.0
    %1372 = vmatpush1.msra.mxu0 0.0
    %1373 = vmatprep.subr.mxu0 0.0
    %1374 = vmatpush1.msra.mxu0 0.0
    %1375 = vmatprep.subr.mxu0 0.0
    %1376 = vmatpush1.msra.mxu0 0.0
    %1377 = vmatprep.subr.mxu0 0.0
    %1378 = vmatpush1.msra.mxu0 0.0
    %1379 = vmatprep.subr.mxu0 0.0
    %1380 = vmatpush1.msra.mxu0 0.0
    %1381 = vmatprep.subr.mxu0 0.0
    %1382 = vmatpush1.msra.mxu0 0.0
    %1383 = vmatprep.subr.mxu0 0.0
    %1384 = vmatpush1.msra.mxu0 0.0
    %1385 = vmatprep.subr.mxu0 0.0
    %1386 = vmatpush1.msra.mxu0 0.0
    %1387 = vmatprep.subr.mxu0 0.0
    %1388 = vmatpush1.msra.mxu0 0.0
    %1389 = vmatprep.subr.mxu0 0.0
    %1390 = vmatpush1.msra.mxu0 0.0
    %1391 = vmatprep.subr.mxu0 0.0
    %1392 = vmatpush1.msra.mxu0 0.0
    %1393 = vmatprep.subr.mxu0 0.0
    %1394 = vmatpush1.msra.mxu0 0.0
    %1395 = vmatprep.subr.mxu0 0.0
    %1396 = vmatpush1.msra.mxu0 0.0
    %1397 = vmatprep.mubr.f32.mxu0 0.0
    %1398 = vmatmul.mubr.f32.gmra.mrb[0].mxu0 %v1307
    %v1399 = vpop.f32.mrb[0].mxu0
    %v1400 = vadd.f32 %v1269, %v1399
    %v1401 = vpop.f32.mrb[0].mxu0
    %1402 = vmatprep.mubr.f32.mxu0 0.0
    %1403 = vmatmul.mubr.f32.gmra.mrb[0].mxu0 %v1310
    %v1404 = vpop.f32.mrb[0].mxu0
    %v1405 = vadd.f32 %v1274, %v1404
    %v1406 = vpop.f32.mrb[0].mxu0
    %1407 = vmatprep.mubr.f32.mxu0 0.0
    %1408 = vmatmul.mubr.f32.gmra.mrb[0].mxu0 %v1313
    %v1409 = vpop.f32.mrb[0].mxu0
    %v1410 = vadd.f32 %v1279, %v1409
    %v1411 = vpop.f32.mrb[0].mxu0
    %1412 = vmatprep.mubr.f32.mxu0 0.0
    %1413 = vmatmul.mubr.f32.gmra.mrb[0].mxu0 %v1316
    %v1414 = vpop.f32.mrb[0].mxu0
    %v1415 = vadd.f32 %v1284, %v1414
    %v1416 = vpop.f32.mrb[0].mxu0
    %1417 = vmatprep.mubr.f32.mxu0 0.0
    %1418 = vmatmul.mubr.f32.gmra.mrb[0].mxu0 %v1319
    %v1419 = vpop.f32.mrb[0].mxu0
    %v1420 = vadd.f32 %v1289, %v1419
    %v1421 = vpop.f32.mrb[0].mxu0
    %1422 = vmatprep.mubr.f32.mxu0 0.0
    %1423 = vmatmul.mubr.f32.gmra.mrb[0].mxu0 %v1322
    %v1424 = vpop.f32.mrb[0].mxu0
    %v1425 = vadd.f32 %v1294, %v1424
    %v1426 = vpop.f32.mrb[0].mxu0
    %1427 = vmatprep.mubr.f32.mxu0 0.0
    %1428 = vmatmul.mubr.f32.gmra.mrb[0].mxu0 %v1325
    %v1429 = vpop.f32.mrb[0].mxu0
    %v1430 = vadd.f32 %v1299, %v1429
    %v1431 = vpop.f32.mrb[0].mxu0
    %1432 = vmatprep.mubr.f32.mxu0 0.0
    %1433 = vmatmul.mubr.f32.gmra.mrb[0].mxu0 %v1328
    %v1434 = vpop.f32.mrb[0].mxu0
    %v1435 = vadd.f32 %v1304, %v1434
    %v1436 = vpop.f32.mrb[0].mxu0
    %1437 = vdwg.mxu0
    %v1438 = vtanh.pop %v1400
    %v1439 = vtanh.pop %v1405
    %v1440 = vtanh.pop %v1410
    %v1441 = vtanh.pop %v1415
    %v1442 = vmax.f32 %v1420, 0.0
    %v1443 = vmax.f32 %v1425, 0.0
    %v1444 = vmax.f32 %v1430, 0.0
    %v1445 = vmax.f32 %v1435, 0.0
    %v1446 = vld [vmem:[%s45] sm:$0xf]
    %v1447 = vld [vmem:[%s47] sm:$0xf]
    %1449 = vset.pattern.permute.xlu0 0
    %1450 = vperm.xlu0 %1449, %v1447
    %v1451 = vpop.permute.xlu0 %1450
    %v1454 = vsel %vm348, %v1446, 0
    %1456 = vmatprep.subr.mxu0 0.0
    %1457 = vmatpush1.msra.mxu0 %v1438
    %1458 = vmatprep.subr.mxu0 0.0
    %1459 = vmatpush1.msra.mxu0 %v1439
    %1460 = vmatprep.subr.mxu0 0.0
    %1461 = vmatpush1.msra.mxu0 %v1440
    %1462 = vmatprep.subr.mxu0 0.0
    %1463 = vmatpush1.msra.mxu0 %v1441
    %1464 = vmatprep.subr.mxu0 0.0
    %1465 = vmatpush1.msra.mxu0 0.0
    %1466 = vmatprep.subr.mxu0 0.0
    %1467 = vmatpush1.msra.mxu0 0.0
    %1468 = vmatprep.subr.mxu0 0.0
    %1469 = vmatpush1.msra.mxu0 0.0
    %1470 = vmatprep.subr.mxu0 0.0
    %1471 = vmatpush1.msra.mxu0 0.0
    %1472 = vmatprep.subr.mxu0 0.0
    %1473 = vmatpush1.msra.mxu0 0.0
    %1474 = vmatprep.subr.mxu0 0.0
    %1475 = vmatpush1.msra.mxu0 0.0
    %1476 = vmatprep.subr.mxu0 0.0
    %1477 = vmatpush1.msra.mxu0 0.0
    %1478 = vmatprep.subr.mxu0 0.0
    %1479 = vmatpush1.msra.mxu0 0.0
    %1480 = vmatprep.subr.mxu0 0.0
    %1481 = vmatpush1.msra.mxu0 0.0
    %1482 = vmatprep.subr.mxu0 0.0
    %1483 = vmatpush1.msra.mxu0 0.0
    %1484 = vmatprep.subr.mxu0 0.0
    %1485 = vmatpush1.msra.mxu0 0.0
    %1486 = vmatprep.subr.mxu0 0.0
    %1487 = vmatpush1.msra.mxu0 0.0
    %1488 = vmatprep.subr.mxu0 0.0
    %1489 = vmatpush1.msra.mxu0 0.0
    %1490 = vmatprep.subr.mxu0 0.0
    %1491 = vmatpush1.msra.mxu0 0.0
    %1492 = vmatprep.subr.mxu0 0.0
    %1493 = vmatpush1.msra.mxu0 0.0
    %1494 = vmatprep.subr.mxu0 0.0
    %1495 = vmatpush1.msra.mxu0 0.0
    %1496 = vmatprep.subr.mxu0 0.0
    %1497 = vmatpush1.msra.mxu0 0.0
    %1498 = vmatprep.subr.mxu0 0.0
    %1499 = vmatpush1.msra.mxu0 0.0
    %1500 = vmatprep.subr.mxu0 0.0
    %1501 = vmatpush1.msra.mxu0 0.0
    %1502 = vmatprep.subr.mxu0 0.0
    %1503 = vmatpush1.msra.mxu0 0.0
    %1504 = vmatprep.subr.mxu0 0.0
    %1505 = vmatpush1.msra.mxu0 0.0
    %1506 = vmatprep.subr.mxu0 0.0
    %1507 = vmatpush1.msra.mxu0 0.0
    %1508 = vmatprep.subr.mxu0 0.0
    %1509 = vmatpush1.msra.mxu0 0.0
    %1510 = vmatprep.subr.mxu0 0.0
    %1511 = vmatpush1.msra.mxu0 0.0
    %1512 = vmatprep.subr.mxu0 0.0
    %1513 = vmatpush1.msra.mxu0 0.0
    %1514 = vmatprep.subr.mxu0 0.0
    %1515 = vmatpush1.msra.mxu0 0.0
    %1516 = vmatprep.subr.mxu0 0.0
    %1517 = vmatpush1.msra.mxu0 0.0
    %1518 = vmatprep.subr.mxu0 0.0
    %1519 = vmatpush1.msra.mxu0 0.0
    %1520 = vmatprep.mubr.f32.mxu0 0.0
    %1521 = vmatmul.mubr.f32.gmra.mrb[0].mxu0 %v1454
    %v1522 = vpop.f32.mrb[0].mxu0
    %v1523 = vadd.f32 %v1451, %v1522
    %v1524 = vpop.f32.mrb[0].mxu0
    %1525 = vdwg.mxu0
    %v1526 = vld [vmem:[%s49] sm:$0xf]
    %v1527 = vld [vmem:[%s51] sm:$0xf]
    %1529 = vset.pattern.permute.xlu0 0
    %1530 = vperm.xlu0 %1529, %v1527
    %v1531 = vpop.permute.xlu0 %1530
    %v1534 = vsel %vm348, %v1526, 0
    %1536 = vmatprep.subr.mxu0 0.0
    %1537 = vmatpush1.msra.mxu0 %v1442
    %1538 = vmatprep.subr.mxu0 0.0
    %1539 = vmatpush1.msra.mxu0 %v1443
    %1540 = vmatprep.subr.mxu0 0.0
    %1541 = vmatpush1.msra.mxu0 %v1444
    %1542 = vmatprep.subr.mxu0 0.0
    %1543 = vmatpush1.msra.mxu0 %v1445
    %1544 = vmatprep.subr.mxu0 0.0
    %1545 = vmatpush1.msra.mxu0 0.0
    %1546 = vmatprep.subr.mxu0 0.0
    %1547 = vmatpush1.msra.mxu0 0.0
    %1548 = vmatprep.subr.mxu0 0.0
    %1549 = vmatpush1.msra.mxu0 0.0
    %1550 = vmatprep.subr.mxu0 0.0
    %1551 = vmatpush1.msra.mxu0 0.0
    %1552 = vmatprep.subr.mxu0 0.0
    %1553 = vmatpush1.msra.mxu0 0.0
    %1554 = vmatprep.subr.mxu0 0.0
    %1555 = vmatpush1.msra.mxu0 0.0
    %1556 = vmatprep.subr.mxu0 0.0
    %1557 = vmatpush1.msra.mxu0 0.0
    %1558 = vmatprep.subr.mxu0 0.0
    %1559 = vmatpush1.msra.mxu0 0.0
    %1560 = vmatprep.subr.mxu0 0.0
    %1561 = vmatpush1.msra.mxu0 0.0
    %1562 = vmatprep.subr.mxu0 0.0
    %1563 = vmatpush1.msra.mxu0 0.0
    %1564 = vmatprep.subr.mxu0 0.0
    %1565 = vmatpush1.msra.mxu0 0.0
    %1566 = vmatprep.subr.mxu0 0.0
    %1567 = vmatpush1.msra.mxu0 0.0
    %1568 = vmatprep.subr.mxu0 0.0
    %1569 = vmatpush1.msra.mxu0 0.0
    %1570 = vmatprep.subr.mxu0 0.0
    %1571 = vmatpush1.msra.mxu0 0.0
    %1572 = vmatprep.subr.mxu0 0.0
    %1573 = vmatpush1.msra.mxu0 0.0
    %1574 = vmatprep.subr.mxu0 0.0
    %1575 = vmatpush1.msra.mxu0 0.0
    %1576 = vmatprep.subr.mxu0 0.0
    %1577 = vmatpush1.msra.mxu0 0.0
    %1578 = vmatprep.subr.mxu0 0.0
    %1579 = vmatpush1.msra.mxu0 0.0
    %1580 = vmatprep.subr.mxu0 0.0
    %1581 = vmatpush1.msra.mxu0 0.0
    %1582 = vmatprep.subr.mxu0 0.0
    %1583 = vmatpush1.msra.mxu0 0.0
    %1584 = vmatprep.subr.mxu0 0.0
    %1585 = vmatpush1.msra.mxu0 0.0
    %1586 = vmatprep.subr.mxu0 0.0
    %1587 = vmatpush1.msra.mxu0 0.0
    %1588 = vmatprep.subr.mxu0 0.0
    %1589 = vmatpush1.msra.mxu0 0.0
    %1590 = vmatprep.subr.mxu0 0.0
    %1591 = vmatpush1.msra.mxu0 0.0
    %1592 = vmatprep.subr.mxu0 0.0
    %1593 = vmatpush1.msra.mxu0 0.0
    %1594 = vmatprep.subr.mxu0 0.0
    %1595 = vmatpush1.msra.mxu0 0.0
    %1596 = vmatprep.subr.mxu0 0.0
    %1597 = vmatpush1.msra.mxu0 0.0
    %1598 = vmatprep.subr.mxu0 0.0
    %1599 = vmatpush1.msra.mxu0 0.0
    %1600 = vmatprep.mubr.f32.mxu0 0.0
    %1601 = vmatmul.mubr.f32.gmra.mrb[0].mxu0 %v1534
    %v1602 = vpop.f32.mrb[0].mxu0
    %v1603 = vadd.f32 %v1531, %v1602
    %v1604 = vpop.f32.mrb[0].mxu0
    %1605 = vdwg.mxu0
    %v1606 = vmul.f32 %v1523, 1.442695
    %v1607 = vpow.pop %v1606
    %v1608 = vmul.f32 %v873, %v1607
    %v1609 = vadd.f32 %v1608, %v1603
    %v1610 = vsel %vm224, %v1523, 0.0
    %v1611 = vrot.slane %v1610, 4
    %v1612 = vadd.f32 %v1610, %v1611
    %v1613 = vrot.slane %v1612, 2
    %v1614 = vadd.f32 %v1612, %v1613
    %v1615 = vrot.slane %v1614, 1
    %v1616 = vadd.f32 %v1614, %v1615
    %v1617 = vadd.f32 %v1249, %v1616
    %v1618 = vld [vmem:[%s53] sm:$0xff]
    %v1619 = vld [vmem:[%s53 + $0x8] sm:$0xff]
    %v1620 = vld [vmem:[%s53 + $0x10] sm:$0xff]
    %v1621 = vld [vmem:[%s53 + $0x18] sm:$0xff]
    %v1622 = vld [vmem:[%s53 + $0x20] sm:$0xff]
    %v1623 = vld [vmem:[%s53 + $0x28] sm:$0xff]
    %v1624 = vld [vmem:[%s53 + $0x30] sm:$0xff]
    %v1625 = vld [vmem:[%s53 + $0x38] sm:$0xff]
    %v1626 = vld [vmem:[%s55] sm:$0xff]
    %v1627 = vld [vmem:[%s55 + $0x8] sm:$0xff]
    %v1628 = vld [vmem:[%s55 + $0x10] sm:$0xff]
    %v1629 = vld [vmem:[%s55 + $0x18] sm:$0xff]
    %v1630 = vld [vmem:[%s55 + $0x20] sm:$0xff]
    %v1631 = vld [vmem:[%s55 + $0x28] sm:$0xff]
    %v1632 = vld [vmem:[%s55 + $0x30] sm:$0xff]
    %v1633 = vld [vmem:[%s55 + $0x38] sm:$0xff]
    %1635 = vset.pattern.permute.xlu0 0
    %1636 = vperm.xlu0 %1635, %v1626
    %v1637 = vpop.permute.xlu0 %1636
    %1640 = vset.pattern.permute.xlu0 0
    %1641 = vperm.xlu0 %1640, %v1627
    %v1642 = vpop.permute.xlu0 %1641
    %1645 = vset.pattern.permute.xlu0 0
    %1646 = vperm.xlu0 %1645, %v1628
    %v1647 = vpop.permute.xlu0 %1646
    %1650 = vset.pattern.permute.xlu0 0
    %1651 = vperm.xlu0 %1650, %v1629
    %v1652 = vpop.permute.xlu0 %1651
    %1655 = vset.pattern.permute.xlu0 0
    %1656 = vperm.xlu0 %1655, %v1630
    %v1657 = vpop.permute.xlu0 %1656
    %1660 = vset.pattern.permute.xlu0 0
    %1661 = vperm.xlu0 %1660, %v1631
    %v1662 = vpop.permute.xlu0 %1661
    %1665 = vset.pattern.permute.xlu0 0
    %1666 = vperm.xlu0 %1665, %v1632
    %v1667 = vpop.permute.xlu0 %1666
    %1670 = vset.pattern.permute.xlu0 0
    %1671 = vperm.xlu0 %1670, %v1633
    %v1672 = vpop.permute.xlu0 %1671
    %v1675 = vsel %vm199, %v1618, 0
    %v1678 = vsel %vm199, %v1619, 0
    %v1681 = vsel %vm199, %v1620, 0
    %v1684 = vsel %vm199, %v1621, 0
    %v1687 = vsel %vm199, %v1622, 0
    %v1690 = vsel %vm199, %v1623, 0
    %v1693 = vsel %vm199, %v1624, 0
    %v1696 = vsel %vm199, %v1625, 0
    %v1699 = vsel %vm224, %v1609, 0
    %1701 = vmatprep.subr.mxu0 0.0
    %1702 = vmatpush1.msra.mxu0 %v1699
    %1703 = vmatprep.subr.mxu0 0.0
    %1704 = vmatpush1.msra.mxu0 0.0
    %1705 = vmatprep.subr.mxu0 0.0
    %1706 = vmatpush1.msra.mxu0 0.0
    %1707 = vmatprep.subr.mxu0 0.0
    %1708 = vmatpush1.msra.mxu0 0.0
    %1709 = vmatprep.subr.mxu0 0.0
    %1710 = vmatpush1.msra.mxu0 0.0
    %1711 = vmatprep.subr.mxu0 0.0
    %1712 = vmatpush1.msra.mxu0 0.0
    %1713 = vmatprep.subr.mxu0 0.0
    %1714 = vmatpush1.msra.mxu0 0.0
    %1715 = vmatprep.subr.mxu0 0.0
    %1716 = vmatpush1.msra.mxu0 0.0
    %1717 = vmatprep.subr.mxu0 0.0
    %1718 = vmatpush1.msra.mxu0 0.0
    %1719 = vmatprep.subr.mxu0 0.0
    %1720 = vmatpush1.msra.mxu0 0.0
    %1721 = vmatprep.subr.mxu0 0.0
    %1722 = vmatpush1.msra.mxu0 0.0
    %1723 = vmatprep.subr.mxu0 0.0
    %1724 = vmatpush1.msra.mxu0 0.0
    %1725 = vmatprep.subr.mxu0 0.0
    %1726 = vmatpush1.msra.mxu0 0.0
    %1727 = vmatprep.subr.mxu0 0.0
    %1728 = vmatpush1.msra.mxu0 0.0
    %1729 = vmatprep.subr.mxu0 0.0
    %1730 = vmatpush1.msra.mxu0 0.0
    %1731 = vmatprep.subr.mxu0 0.0
    %1732 = vmatpush1.msra.mxu0 0.0
    %1733 = vmatprep.subr.mxu0 0.0
    %1734 = vmatpush1.msra.mxu0 0.0
    %1735 = vmatprep.subr.mxu0 0.0
    %1736 = vmatpush1.msra.mxu0 0.0
    %1737 = vmatprep.subr.mxu0 0.0
    %1738 = vmatpush1.msra.mxu0 0.0
    %1739 = vmatprep.subr.mxu0 0.0
    %1740 = vmatpush1.msra.mxu0 0.0
    %1741 = vmatprep.subr.mxu0 0.0
    %1742 = vmatpush1.msra.mxu0 0.0
    %1743 = vmatprep.subr.mxu0 0.0
    %1744 = vmatpush1.msra.mxu0 0.0
    %1745 = vmatprep.subr.mxu0 0.0
    %1746 = vmatpush1.msra.mxu0 0.0
    %1747 = vmatprep.subr.mxu0 0.0
    %1748 = vmatpush1.msra.mxu0 0.0
    %1749 = vmatprep.subr.mxu0 0.0
    %1750 = vmatpush1.msra.mxu0 0.0
    %1751 = vmatprep.subr.mxu0 0.0
    %1752 = vmatpush1.msra.mxu0 0.0
    %1753 = vmatprep.subr.mxu0 0.0
    %1754 = vmatpush1.msra.mxu0 0.0
    %1755 = vmatprep.subr.mxu0 0.0
    %1756 = vmatpush1.msra.mxu0 0.0
    %1757 = vmatprep.subr.mxu0 0.0
    %1758 = vmatpush1.msra.mxu0 0.0
    %1759 = vmatprep.subr.mxu0 0.0
    %1760 = vmatpush1.msra.mxu0 0.0
    %1761 = vmatprep.subr.mxu0 0.0
    %1762 = vmatpush1.msra.mxu0 0.0
    %1763 = vmatprep.subr.mxu0 0.0
    %1764 = vmatpush1.msra.mxu0 0.0
    %1765 = vmatprep.mubr.f32.mxu0 0.0
    %1766 = vmatmul.mubr.f32.gmra.mrb[0].mxu0 %v1675
    %v1767 = vpop.f32.mrb[0].mxu0
    %v1768 = vadd.f32 %v1637, %v1767
    %v1769 = vpop.f32.mrb[0].mxu0
    %1770 = vmatprep.mubr.f32.mxu0 0.0
    %1771 = vmatmul.mubr.f32.gmra.mrb[0].mxu0 %v1678
    %v1772 = vpop.f32.mrb[0].mxu0
    %v1773 = vadd.f32 %v1642, %v1772
    %v1774 = vpop.f32.mrb[0].mxu0
    %1775 = vmatprep.mubr.f32.mxu0 0.0
    %1776 = vmatmul.mubr.f32.gmra.mrb[0].mxu0 %v1681
    %v1777 = vpop.f32.mrb[0].mxu0
    %v1778 = vadd.f32 %v1647, %v1777
    %v1779 = vpop.f32.mrb[0].mxu0
    %1780 = vmatprep.mubr.f32.mxu0 0.0
    %1781 = vmatmul.mubr.f32.gmra.mrb[0].mxu0 %v1684
    %v1782 = vpop.f32.mrb[0].mxu0
    %v1783 = vadd.f32 %v1652, %v1782
    %v1784 = vpop.f32.mrb[0].mxu0
    %1785 = vmatprep.mubr.f32.mxu0 0.0
    %1786 = vmatmul.mubr.f32.gmra.mrb[0].mxu0 %v1687
    %v1787 = vpop.f32.mrb[0].mxu0
    %v1788 = vadd.f32 %v1657, %v1787
    %v1789 = vpop.f32.mrb[0].mxu0
    %1790 = vmatprep.mubr.f32.mxu0 0.0
    %1791 = vmatmul.mubr.f32.gmra.mrb[0].mxu0 %v1690
    %v1792 = vpop.f32.mrb[0].mxu0
    %v1793 = vadd.f32 %v1662, %v1792
    %v1794 = vpop.f32.mrb[0].mxu0
    %1795 = vmatprep.mubr.f32.mxu0 0.0
    %1796 = vmatmul.mubr.f32.gmra.mrb[0].mxu0 %v1693
    %v1797 = vpop.f32.mrb[0].mxu0
    %v1798 = vadd.f32 %v1667, %v1797
    %v1799 = vpop.f32.mrb[0].mxu0
    %1800 = vmatprep.mubr.f32.mxu0 0.0
    %1801 = vmatmul.mubr.f32.gmra.mrb[0].mxu0 %v1696
    %v1802 = vpop.f32.mrb[0].mxu0
    %v1803 = vadd.f32 %v1672, %v1802
    %v1804 = vpop.f32.mrb[0].mxu0
    %1805 = vdwg.mxu0
    %v1806 = vtanh.pop %v1768
    %v1807 = vtanh.pop %v1773
    %v1808 = vtanh.pop %v1778
    %v1809 = vtanh.pop %v1783
    %v1810 = vmax.f32 %v1788, 0.0
    %v1811 = vmax.f32 %v1793, 0.0
    %v1812 = vmax.f32 %v1798, 0.0
    %v1813 = vmax.f32 %v1803, 0.0
    %v1814 = vld [vmem:[%s57] sm:$0xf]
    %v1815 = vld [vmem:[%s59] sm:$0xf]
    %1817 = vset.pattern.permute.xlu0 0
    %1818 = vperm.xlu0 %1817, %v1815
    %v1819 = vpop.permute.xlu0 %1818
    %v1822 = vsel %vm348, %v1814, 0
    %1824 = vmatprep.subr.mxu0 0.0
    %1825 = vmatpush1.msra.mxu0 %v1806
    %1826 = vmatprep.subr.mxu0 0.0
    %1827 = vmatpush1.msra.mxu0 %v1807
    %1828 = vmatprep.subr.mxu0 0.0
    %1829 = vmatpush1.msra.mxu0 %v1808
    %1830 = vmatprep.subr.mxu0 0.0
    %1831 = vmatpush1.msra.mxu0 %v1809
    %1832 = vmatprep.subr.mxu0 0.0
    %1833 = vmatpush1.msra.mxu0 0.0
    %1834 = vmatprep.subr.mxu0 0.0
    %1835 = vmatpush1.msra.mxu0 0.0
    %1836 = vmatprep.subr.mxu0 0.0
    %1837 = vmatpush1.msra.mxu0 0.0
    %1838 = vmatprep.subr.mxu0 0.0
    %1839 = vmatpush1.msra.mxu0 0.0
    %1840 = vmatprep.subr.mxu0 0.0
    %1841 = vmatpush1.msra.mxu0 0.0
    %1842 = vmatprep.subr.mxu0 0.0
    %1843 = vmatpush1.msra.mxu0 0.0
    %1844 = vmatprep.subr.mxu0 0.0
    %1845 = vmatpush1.msra.mxu0 0.0
    %1846 = vmatprep.subr.mxu0 0.0
    %1847 = vmatpush1.msra.mxu0 0.0
    %1848 = vmatprep.subr.mxu0 0.0
    %1849 = vmatpush1.msra.mxu0 0.0
    %1850 = vmatprep.subr.mxu0 0.0
    %1851 = vmatpush1.msra.mxu0 0.0
    %1852 = vmatprep.subr.mxu0 0.0
    %1853 = vmatpush1.msra.mxu0 0.0
    %1854 = vmatprep.subr.mxu0 0.0
    %1855 = vmatpush1.msra.mxu0 0.0
    %1856 = vmatprep.subr.mxu0 0.0
    %1857 = vmatpush1.msra.mxu0 0.0
    %1858 = vmatprep.subr.mxu0 0.0
    %1859 = vmatpush1.msra.mxu0 0.0
    %1860 = vmatprep.subr.mxu0 0.0
    %1861 = vmatpush1.msra.mxu0 0.0
    %1862 = vmatprep.subr.mxu0 0.0
    %1863 = vmatpush1.msra.mxu0 0.0
    %1864 = vmatprep.subr.mxu0 0.0
    %1865 = vmatpush1.msra.mxu0 0.0
    %1866 = vmatprep.subr.mxu0 0.0
    %1867 = vmatpush1.msra.mxu0 0.0
    %1868 = vmatprep.subr.mxu0 0.0
    %1869 = vmatpush1.msra.mxu0 0.0
    %1870 = vmatprep.subr.mxu0 0.0
    %1871 = vmatpush1.msra.mxu0 0.0
    %1872 = vmatprep.subr.mxu0 0.0
    %1873 = vmatpush1.msra.mxu0 0.0
    %1874 = vmatprep.subr.mxu0 0.0
    %1875 = vmatpush1.msra.mxu0 0.0
    %1876 = vmatprep.subr.mxu0 0.0
    %1877 = vmatpush1.msra.mxu0 0.0
    %1878 = vmatprep.subr.mxu0 0.0
    %1879 = vmatpush1.msra.mxu0 0.0
    %1880 = vmatprep.subr.mxu0 0.0
    %1881 = vmatpush1.msra.mxu0 0.0
    %1882 = vmatprep.subr.mxu0 0.0
    %1883 = vmatpush1.msra.mxu0 0.0
    %1884 = vmatprep.subr.mxu0 0.0
    %1885 = vmatpush1.msra.mxu0 0.0
    %1886 = vmatprep.subr.mxu0 0.0
    %1887 = vmatpush1.msra.mxu0 0.0
    %1888 = vmatprep.mubr.f32.mxu0 0.0
    %1889 = vmatmul.mubr.f32.gmra.mrb[0].mxu0 %v1822
    %v1890 = vpop.f32.mrb[0].mxu0
    %v1891 = vadd.f32 %v1819, %v1890
    %v1892 = vpop.f32.mrb[0].mxu0
    %1893 = vdwg.mxu0
    %v1894 = vld [vmem:[%s61] sm:$0xf]
    %v1895 = vld [vmem:[%s63] sm:$0xf]
    %1897 = vset.pattern.permute.xlu0 0
    %1898 = vperm.xlu0 %1897, %v1895
    %v1899 = vpop.permute.xlu0 %1898
    %v1902 = vsel %vm348, %v1894, 0
    %1904 = vmatprep.subr.mxu0 0.0
    %1905 = vmatpush1.msra.mxu0 %v1810
    %1906 = vmatprep.subr.mxu0 0.0
    %1907 = vmatpush1.msra.mxu0 %v1811
    %1908 = vmatprep.subr.mxu0 0.0
    %1909 = vmatpush1.msra.mxu0 %v1812
    %1910 = vmatprep.subr.mxu0 0.0
    %1911 = vmatpush1.msra.mxu0 %v1813
    %1912 = vmatprep.subr.mxu0 0.0
    %1913 = vmatpush1.msra.mxu0 0.0
    %1914 = vmatprep.subr.mxu0 0.0
    %1915 = vmatpush1.msra.mxu0 0.0
    %1916 = vmatprep.subr.mxu0 0.0
    %1917 = vmatpush1.msra.mxu0 0.0
    %1918 = vmatprep.subr.mxu0 0.0
    %1919 = vmatpush1.msra.mxu0 0.0
    %1920 = vmatprep.subr.mxu0 0.0
    %1921 = vmatpush1.msra.mxu0 0.0
    %1922 = vmatprep.subr.mxu0 0.0
    %1923 = vmatpush1.msra.mxu0 0.0
    %1924 = vmatprep.subr.mxu0 0.0
    %1925 = vmatpush1.msra.mxu0 0.0
    %1926 = vmatprep.subr.mxu0 0.0
    %1927 = vmatpush1.msra.mxu0 0.0
    %1928 = vmatprep.subr.mxu0 0.0
    %1929 = vmatpush1.msra.mxu0 0.0
    %1930 = vmatprep.subr.mxu0 0.0
    %1931 = vmatpush1.msra.mxu0 0.0
    %1932 = vmatprep.subr.mxu0 0.0
    %1933 = vmatpush1.msra.mxu0 0.0
    %1934 = vmatprep.subr.mxu0 0.0
    %1935 = vmatpush1.msra.mxu0 0.0
    %1936 = vmatprep.subr.mxu0 0.0
    %1937 = vmatpush1.msra.mxu0 0.0
    %1938 = vmatprep.subr.mxu0 0.0
    %1939 = vmatpush1.msra.mxu0 0.0
    %1940 = vmatprep.subr.mxu0 0.0
    %1941 = vmatpush1.msra.mxu0 0.0
    %1942 = vmatprep.subr.mxu0 0.0
    %1943 = vmatpush1.msra.mxu0 0.0
    %1944 = vmatprep.subr.mxu0 0.0
    %1945 = vmatpush1.msra.mxu0 0.0
    %1946 = vmatprep.subr.mxu0 0.0
    %1947 = vmatpush1.msra.mxu0 0.0
    %1948 = vmatprep.subr.mxu0 0.0
    %1949 = vmatpush1.msra.mxu0 0.0
    %1950 = vmatprep.subr.mxu0 0.0
    %1951 = vmatpush1.msra.mxu0 0.0
    %1952 = vmatprep.subr.mxu0 0.0
    %1953 = vmatpush1.msra.mxu0 0.0
    %1954 = vmatprep.subr.mxu0 0.0
    %1955 = vmatpush1.msra.mxu0 0.0
    %1956 = vmatprep.subr.mxu0 0.0
    %1957 = vmatpush1.msra.mxu0 0.0
    %1958 = vmatprep.subr.mxu0 0.0
    %1959 = vmatpush1.msra.mxu0 0.0
    %1960 = vmatprep.subr.mxu0 0.0
    %1961 = vmatpush1.msra.mxu0 0.0
    %1962 = vmatprep.subr.mxu0 0.0
    %1963 = vmatpush1.msra.mxu0 0.0
    %1964 = vmatprep.subr.mxu0 0.0
    %1965 = vmatpush1.msra.mxu0 0.0
    %1966 = vmatprep.subr.mxu0 0.0
    %1967 = vmatpush1.msra.mxu0 0.0
    %1968 = vmatprep.mubr.f32.mxu0 0.0
    %1969 = vmatmul.mubr.f32.gmra.mrb[0].mxu0 %v1902
    %v1970 = vpop.f32.mrb[0].mxu0
    %v1971 = vadd.f32 %v1899, %v1970
    %v1972 = vpop.f32.mrb[0].mxu0
    %1973 = vdwg.mxu0
    %v1974 = vmul.f32 %v1891, 1.442695
    %v1975 = vpow.pop %v1974
    %v1976 = vmul.f32 %v1241, %v1975
    %v1977 = vadd.f32 %v1976, %v1971
    %v1978 = vsel %vm224, %v1891, 0.0
    %v1979 = vrot.slane %v1978, 4
    %v1980 = vadd.f32 %v1978, %v1979
    %v1981 = vrot.slane %v1980, 2
    %v1982 = vadd.f32 %v1980, %v1981
    %v1983 = vrot.slane %v1982, 1
    %v1984 = vadd.f32 %v1982, %v1983
    %v1985 = vadd.f32 %v1617, %v1984
    %1986 = vst [vmem:[#allocation2] sm:$0xf] %v1609
    %1987 = vst [vmem:[#allocation4] sm:$0xf] %v1977
    %1988 = vst [vmem:[#allocation6] sm:$0x1] %v1985
    // Predicated region
    $region130: #{tpu_custom_call.1} parent=1 // pred_check
      _
    $region131: #{tpu_custom_call.1} parent=1 // pred_check_branch
      %1990 = sbr.rel (0) target = $region133
    $region132: #{tpu_custom_call.1} parent=1 // pred_region
      %s1992 = ssub.s32 64, 64
      %1993 = vsyncadd [#allocation3], %s1992
      %s1995 = sshll.u32 [#allocation2], 4
      %s1996 = int_to_ptr.vmem [resolvable:$true] %s1995
      %1998 = dma.vmem_to_hbm [thread:$0]  %s1996, 64, %s65, [#allocation3]
    $region133: #{tpu_custom_call.1} parent=1 // pred_fallthru
      _
    // Predicated region
    $region134: #{tpu_custom_call.1} parent=1 // pred_check
      _
    $region135: #{tpu_custom_call.1} parent=1 // pred_check_branch
      %2000 = sbr.rel (0) target = $region137
    $region136: #{tpu_custom_call.1} parent=1 // pred_region
      %s2002 = ssub.s32 64, 64
      %2003 = vsyncadd [#allocation5], %s2002
      %s2005 = sshll.u32 [#allocation4], 4
      %s2006 = int_to_ptr.vmem [resolvable:$true] %s2005
      %2008 = dma.vmem_to_hbm [thread:$0]  %s2006, 64, %s67, [#allocation5]
    $region137: #{tpu_custom_call.1} parent=1 // pred_fallthru
      _
    // Predicated region
    $region138: #{tpu_custom_call.1} parent=1 // pred_check
      _
    $region139: #{tpu_custom_call.1} parent=1 // pred_check_branch
      %2010 = sbr.rel (0) target = $region141
    $region140: #{tpu_custom_call.1} parent=1 // pred_region
      %s2012 = ssub.s32 16, 16
      %2013 = vsyncadd [#allocation5], %s2012
      %s2015 = sshll.u32 [#allocation6], 4
      %s2016 = int_to_ptr.vmem [resolvable:$true] %s2015
      %2018 = dma.vmem_to_hbm [thread:$0]  %s2016, 16, %s69, [#allocation5]
    $region141: #{tpu_custom_call.1} parent=1 // pred_fallthru
      _
    // Predicated region
    $region142: #{tpu_custom_call.1} parent=1 // pred_check
      _
    $region143: #{tpu_custom_call.1} parent=1 // pred_check_branch
      %2020 = sbr.rel (0) target = $region145
    $region144: #{tpu_custom_call.1} parent=1 // pred_region
      %2021 = dma.done [#allocation3], 64
    $region145: #{tpu_custom_call.1} parent=1 // pred_fallthru
      _
    // Predicated region
    $region146: #{tpu_custom_call.1} parent=1 // pred_check
      _
    $region147: #{tpu_custom_call.1} parent=1 // pred_check_branch
      %2023 = sbr.rel (0) target = $region149
    $region148: #{tpu_custom_call.1} parent=1 // pred_region
      %2024 = dma.done [#allocation5], 64
    $region149: #{tpu_custom_call.1} parent=1 // pred_fallthru
      _
    // Predicated region
    $region150: #{tpu_custom_call.1} parent=1 // pred_check
      _
    $region151: #{tpu_custom_call.1} parent=1 // pred_check_branch
      %2026 = sbr.rel (0) target = $region153
    $region152: #{tpu_custom_call.1} parent=1 // pred_region
      %2027 = dma.done [#allocation5], 16
    $region153: #{tpu_custom_call.1} parent=1 // pred_fallthru
      _
    %2028 = vsyncpa [#allocation3], 1
    %2029 = vsyncpa [#allocation5], 1

</llo_original>
